<compile_context>
chip_gen: v7x
topology: tpu7x:2x2x1
jax: 0.10.0
libtpu: 0.0.40
codegen_flags: <defaults>
</compile_context>

<pallas_src>
import jax
import jax.numpy as jnp
from jax import lax
from jax.experimental import pallas as pl
from jax.experimental.pallas import tpu as pltpu


def _make_mlp_kernel(n_layers):
    """Fused MLP kernel. refs = (x, w1, b1, ..., wn, bn, out).

    x arrives batch-major (TILE_B, d_in); intermediates are carried
    feature-major (d_l, TILE_B) so the batch sits on the lane axis; the output
    is produced batch-major (TILE_B, d_out) by folding the boundary transposes
    into the first/last MXU contractions.
    """
    assert n_layers >= 2, "Cell always has layer_inp and layer_out"

    def kernel(*refs):
        x_ref = refs[0]
        o_ref = refs[-1]
        wb = refs[1:-1]

        x = x_ref[...]                                    # (TILE_B, d_in) batch-major

        # layer_inp: h = W0 @ x^T  -> feature-major (d1, TILE_B)
        w = wb[0][...]                                    # (d1, d_in) PyTorch layout
        b = wb[1][...]                                    # (d1, 1)
        h = lax.dot_general(w, x, (((1,), (1,)), ((), ())),
                            preferred_element_type=jnp.float32) + b

        for li in range(1, n_layers):
            h = jnp.maximum(h, 0.0)                       # activation of previous layer
            w = wb[2 * li][...]
            b = wb[2 * li + 1][...]
            if li < n_layers - 1:
                # hidden layers stay feature-major: (d_l, TILE_B)
                h = jnp.dot(w, h, preferred_element_type=jnp.float32) + b
            else:
                # layer_out: (TILE_B, d_out) = h^T @ W^T, bias is (1, d_out)
                h = lax.dot_general(h, w, (((0,), (1,)), ((), ())),
                                    preferred_element_type=jnp.float32) + b

        o_ref[...] = h.astype(o_ref.dtype)                # no final activation

    return kernel


def cell_forward(x, params, *, tile_b=None):
    """Fused Cell forward.

    x:       (B, d_in) float32, batch-major (PyTorch convention).
    params:  list of (W, b) in PyTorch nn.Linear layout: W (d_out, d_in), b (d_out,).
    tile_b:  batch tile (multiple of 128).  Default: min(512, round_up(B, 128)).
             On single-TC chips (v5e/v6e) a single block (e.g. 1024 for B=1000)
             is optimal; on v7x keep >=2 blocks so both TensorCores get work.
    Returns: (B, d_out) float32.
    """
    B, d_in = x.shape
    n_layers = len(params)
    assert n_layers >= 2
    d_out = params[-1][0].shape[0]

    if tile_b is None:
        bp = pl.cdiv(B, 128) * 128
        tile_b = bp if bp <= 512 else 512
    assert tile_b % 128 == 0 and tile_b >= 128, "tile_b must be a multiple of 128"
    n_blk = pl.cdiv(B, tile_b)

    x = x.astype(jnp.float32)

    # Weights/biases: constant index_map -> fetched once, VMEM-resident.
    resident = lambda shape: pl.BlockSpec(shape, lambda i: (0, 0))

    in_specs = [pl.BlockSpec((tile_b, d_in), lambda i: (i, 0))]
    flat_args = [x]
    for li, (w, b) in enumerate(params):
        w = w.astype(jnp.float32)
        if li < n_layers - 1:
            b2 = b.reshape(-1, 1).astype(jnp.float32)     # (d_l, 1): feature-major layers
        else:
            b2 = b.reshape(1, -1).astype(jnp.float32)     # (1, d_out): batch-major output
        in_specs += [resident(w.shape), resident(b2.shape)]
        flat_args += [w, b2]

    out = pl.pallas_call(
        _make_mlp_kernel(n_layers),
        out_shape=jax.ShapeDtypeStruct((B, d_out), jnp.float32),
        grid=(n_blk,),
        in_specs=in_specs,
        out_specs=pl.BlockSpec((tile_b, d_out), lambda i: (i, 0)),
        compiler_params=pltpu.CompilerParams(
            dimension_semantics=("parallel",),  # shards batch blocks across TCs on v7x
        ),
    )(*flat_args)

    return out


def init_cell_params(key, dimensions):
    """Deterministic synthetic parameters for Cell(dimensions) in PyTorch layout."""
    params = []
    for i in range(len(dimensions) - 1):
        d_in, d_out = dimensions[i], dimensions[i + 1]
        key, kw, kb = jax.random.split(key, 3)
        bound = 1.0 / (d_in ** 0.5)                 # nn.Linear default init range
        w = jax.random.uniform(kw, (d_out, d_in), jnp.float32, -bound, bound)
        b = jax.random.uniform(kb, (d_out,), jnp.float32, -bound, bound)
        params.append((w, b))
    return params


def cell_forward_ref(x, params):
    """Pure-JAX batch-major reference (matches PyTorch Cell.forward)."""
    h = x
    n = len(params)
    for li, (w, b) in enumerate(params):
        h = h @ w.T + b
        if li < n - 1:
            h = jnp.maximum(h, 0.0)
    return h


if __name__ == "__main__":
    # dimensions = [in, hidden, hidden, out] -> layer_inp, 1 hidden layer, layer_out
    dimensions = [16, 32, 32, 8]
    batch = 1000          # non-multiple of 128: exercises ragged last block (2 grid steps)

    key = jax.random.PRNGKey(0)
    key, kx = jax.random.split(key)
    x = jax.random.normal(kx, (batch, dimensions[0]), dtype=jnp.float32)

    params = init_cell_params(key, dimensions)

    out = cell_forward(x, params)     # auto tile_b -> 512, n_blk = 2
    out = jax.block_until_ready(out)

    ref = cell_forward_ref(x, params)
    assert out.shape == (batch, dimensions[-1])
    assert jnp.allclose(out, ref, atol=1e-4, rtol=1e-4), "mismatch vs. reference"

    print("KERNEL_OK")
</pallas_src>

<mosaic_0001>
module attributes {stable_mosaic.version = 11 : i64} {
  func.func @kernel(%arg0: i32, %arg1: memref<512x16xf32, #tpu.memory_space<vmem>>, %arg2: memref<32x16xf32, #tpu.memory_space<vmem>>, %arg3: memref<32x1xf32, #tpu.memory_space<vmem>>, %arg4: memref<32x32xf32, #tpu.memory_space<vmem>>, %arg5: memref<32x1xf32, #tpu.memory_space<vmem>>, %arg6: memref<8x32xf32, #tpu.memory_space<vmem>>, %arg7: memref<1x8xf32, #tpu.memory_space<vmem>>, %arg8: memref<512x8xf32, #tpu.memory_space<vmem>>) attributes {dimension_semantics = [#tpu.dimension_semantics<parallel>], iteration_bounds = array<i64: 2>, scalar_prefetch = 0 : i64, scratch_operands = 0 : i64, tpu.core_type = #tpu.core_type<tc>, window_params = [{transform_indices = @transform_0, window_bounds = array<i64: 512, 16>}, {pipeline_mode = #tpu.pipeline_mode<synchronous>, transform_indices = @transform_1, window_bounds = array<i64: 32, 16>}, {pipeline_mode = #tpu.pipeline_mode<synchronous>, transform_indices = @transform_2, window_bounds = array<i64: 32, 1>}, {pipeline_mode = #tpu.pipeline_mode<synchronous>, transform_indices = @transform_3, window_bounds = array<i64: 32, 32>}, {pipeline_mode = #tpu.pipeline_mode<synchronous>, transform_indices = @transform_4, window_bounds = array<i64: 32, 1>}, {pipeline_mode = #tpu.pipeline_mode<synchronous>, transform_indices = @transform_5, window_bounds = array<i64: 8, 32>}, {pipeline_mode = #tpu.pipeline_mode<synchronous>, transform_indices = @transform_6, window_bounds = array<i64: 1, 8>}, {transform_indices = @transform_7, window_bounds = array<i64: 512, 8>}]} {
    %c0 = arith.constant 0 : index
    %c0_0 = arith.constant 0 : index
    %0 = vector.load %arg1[%c0, %c0_0] : memref<512x16xf32, #tpu.memory_space<vmem>>, vector<512x16xf32>
    %c0_1 = arith.constant 0 : index
    %c0_2 = arith.constant 0 : index
    %1 = vector.load %arg2[%c0_1, %c0_2] : memref<32x16xf32, #tpu.memory_space<vmem>>, vector<32x16xf32>
    %c0_3 = arith.constant 0 : index
    %c0_4 = arith.constant 0 : index
    %2 = vector.load %arg3[%c0_3, %c0_4] : memref<32x1xf32, #tpu.memory_space<vmem>>, vector<32x1xf32>
    %cst = arith.constant dense<0.000000e+00> : vector<32x512xf32>
    %3 = tpu.matmul %1, %0, %cst {dimension_numbers = #tpu.dot_dimension_numbers<[1], [1], [0], [0], [0, 0, 1, 0], [], []>} : vector<32x16xf32>, vector<512x16xf32>, vector<32x512xf32> -> vector<32x512xf32>
    %4 = vector.broadcast %2 : vector<32x1xf32> to vector<32x512xf32>
    %5 = arith.addf %3, %4 : vector<32x512xf32>
    %cst_5 = arith.constant 0.000000e+00 : f32
    %6 = vector.broadcast %cst_5 : f32 to vector<32x512xf32>
    %7 = arith.maximumf %5, %6 : vector<32x512xf32>
    %c0_6 = arith.constant 0 : index
    %c0_7 = arith.constant 0 : index
    %8 = vector.load %arg4[%c0_6, %c0_7] : memref<32x32xf32, #tpu.memory_space<vmem>>, vector<32x32xf32>
    %c0_8 = arith.constant 0 : index
    %c0_9 = arith.constant 0 : index
    %9 = vector.load %arg5[%c0_8, %c0_9] : memref<32x1xf32, #tpu.memory_space<vmem>>, vector<32x1xf32>
    %cst_10 = arith.constant dense<0.000000e+00> : vector<32x512xf32>
    %10 = tpu.matmul %8, %7, %cst_10 {dimension_numbers = #tpu.dot_dimension_numbers<[1], [0], [0], [1], [0, 0, 1, 1], [], []>} : vector<32x32xf32>, vector<32x512xf32>, vector<32x512xf32> -> vector<32x512xf32>
    %11 = vector.broadcast %9 : vector<32x1xf32> to vector<32x512xf32>
    %12 = arith.addf %10, %11 : vector<32x512xf32>
    %cst_11 = arith.constant 0.000000e+00 : f32
    %13 = vector.broadcast %cst_11 : f32 to vector<32x512xf32>
    %14 = arith.maximumf %12, %13 : vector<32x512xf32>
    %c0_12 = arith.constant 0 : index
    %c0_13 = arith.constant 0 : index
    %15 = vector.load %arg6[%c0_12, %c0_13] : memref<8x32xf32, #tpu.memory_space<vmem>>, vector<8x32xf32>
    %c0_14 = arith.constant 0 : index
    %c0_15 = arith.constant 0 : index
    %16 = vector.load %arg7[%c0_14, %c0_15] : memref<1x8xf32, #tpu.memory_space<vmem>>, vector<1x8xf32>
    %cst_16 = arith.constant dense<0.000000e+00> : vector<512x8xf32>
    %17 = tpu.matmul %14, %15, %cst_16 {dimension_numbers = #tpu.dot_dimension_numbers<[0], [1], [1], [0], [0, 1, 1, 0], [], []>} : vector<32x512xf32>, vector<8x32xf32>, vector<512x8xf32> -> vector<512x8xf32>
    %18 = vector.broadcast %16 : vector<1x8xf32> to vector<512x8xf32>
    %19 = arith.addf %17, %18 : vector<512x8xf32>
    %c0_17 = arith.constant 0 : index
    %c0_18 = arith.constant 0 : index
    %20 = vector.load %arg8[%c0_17, %c0_18] : memref<512x8xf32, #tpu.memory_space<vmem>>, vector<512x8xf32>
    tpu.vector_store %arg8[%c0_17, %c0_18], %19 {strides = array<i32>} : memref<512x8xf32, #tpu.memory_space<vmem>>, vector<512x8xf32>,
    return
  }
  func.func @transform_0(%arg0: i32) -> (i32, i32) {
    %c0_i32 = arith.constant 0 : i32
    %c0_i32_0 = arith.constant 0 : i32
    return %arg0, %c0_i32 : i32, i32
  }
  func.func @transform_1(%arg0: i32) -> (i32, i32) {
    %c0_i32 = arith.constant 0 : i32
    %c0_i32_0 = arith.constant 0 : i32
    %c0_i32_1 = arith.constant 0 : i32
    return %c0_i32, %c0_i32_0 : i32, i32
  }
  func.func @transform_2(%arg0: i32) -> (i32, i32) {
    %c0_i32 = arith.constant 0 : i32
    %c0_i32_0 = arith.constant 0 : i32
    %c0_i32_1 = arith.constant 0 : i32
    return %c0_i32, %c0_i32_0 : i32, i32
  }
  func.func @transform_3(%arg0: i32) -> (i32, i32) {
    %c0_i32 = arith.constant 0 : i32
    %c0_i32_0 = arith.constant 0 : i32
    %c0_i32_1 = arith.constant 0 : i32
    return %c0_i32, %c0_i32_0 : i32, i32
  }
  func.func @transform_4(%arg0: i32) -> (i32, i32) {
    %c0_i32 = arith.constant 0 : i32
    %c0_i32_0 = arith.constant 0 : i32
    %c0_i32_1 = arith.constant 0 : i32
    return %c0_i32, %c0_i32_0 : i32, i32
  }
  func.func @transform_5(%arg0: i32) -> (i32, i32) {
    %c0_i32 = arith.constant 0 : i32
    %c0_i32_0 = arith.constant 0 : i32
    %c0_i32_1 = arith.constant 0 : i32
    return %c0_i32, %c0_i32_0 : i32, i32
  }
  func.func @transform_6(%arg0: i32) -> (i32, i32) {
    %c0_i32 = arith.constant 0 : i32
    %c0_i32_0 = arith.constant 0 : i32
    %c0_i32_1 = arith.constant 0 : i32
    return %c0_i32, %c0_i32_0 : i32, i32
  }
  func.func @transform_7(%arg0: i32) -> (i32, i32) {
    %c0_i32 = arith.constant 0 : i32
    %c0_i32_0 = arith.constant 0 : i32
    return %arg0, %c0_i32 : i32, i32
  }
}

</mosaic_0001>

<llo_original>
// kernel: tpu_custom_call.1
$region0: #{tpu_custom_call.1}
  #allocation0 [shape = 'u32[]', space=smem, size = 0x4, offset = 0x4, fixed_abs, tag = 'smem constant byte address 0x4 - core index']
  #allocation1 [shape = 'u32[144,128]{1,0:T(1,128)}', space=vmem, size = 0x12000, scoped, tag = 'internal scratch']
  %s0 = inlined_call_operand.vmem [shape: f32[1000,16], index: 0, kind: input, shape index: {}]
  %s1 = inlined_call_operand.vmem [shape: f32[32,16], index: 1, kind: input, shape index: {}]
  %s2 = inlined_call_operand.vmem [shape: f32[32,1], index: 2, kind: input, shape index: {}]
  %s3 = inlined_call_operand.vmem [shape: f32[32,32], index: 3, kind: input, shape index: {}]
  %s4 = inlined_call_operand.vmem [shape: f32[32,1], index: 4, kind: input, shape index: {}]
  %s5 = inlined_call_operand.vmem [shape: f32[8,32], index: 5, kind: input, shape index: {}]
  %s6 = inlined_call_operand.vmem [shape: f32[1,8], index: 6, kind: input, shape index: {}]
  %s7 = inlined_call_operand.vmem [shape: f32[1000,8], index: 7, kind: output, shape index: {}]
  %s8 = sld [smem:[#allocation0]]
  $region109: #{tpu_custom_call.1} parent=0
    _
  %s10 = ssub.s32 1, %s8
  %s11 = scalar_select 0, %s10, %s8
  $region1: #{tpu_custom_call.1} parent=0
    #allocation2 [shape = 'u8[524288]{0}', space=vmem, size = 0x80000, scoped, tag = 'output window, operand 0']
    loop: start=0, step=1, limit=4
    $region2: #{tpu_custom_call.1} parent=1 // loop_pre_header
      _
    $region3: #{tpu_custom_call.1} parent=1 // loop_header
      %s13 = sphi 0, %s17
      %p14 = scmp.ge.s32.totalorder %s13, 4
      %s23 = sphi 0, %s25
      %s26 = sphi 0, %s23
      %s27 = sphi 0, %s26
      %s43 = sphi 0, %s27
      %s47 = sphi 0, %s47
      %s49 = sphi 0, %s47
      %s50 = sphi 0, %s49
      %s64 = sphi 0, %s50
      %s68 = sphi 0, %s68
      %s70 = sphi 0, %s68
      %s71 = sphi 0, %s70
      %s85 = sphi 0, %s71
      %s89 = sphi 0, %s89
      %s91 = sphi 0, %s89
      %s92 = sphi 0, %s91
      %s106 = sphi 0, %s92
      %s110 = sphi 0, %s110
      %s112 = sphi 0, %s110
      %s113 = sphi 0, %s112
      %s127 = sphi 0, %s113
      %s131 = sphi 0, %s131
      %s133 = sphi 0, %s131
      %s134 = sphi 0, %s133
      %s148 = sphi 0, %s134
      %s152 = sphi 0, %s152
      %s154 = sphi 0, %s152
      %s155 = sphi 0, %s154
      %s169 = sphi 0, %s155
      %s175 = sphi 0, %s177
      %s178 = sphi 0, %s175
      %s179 = sphi 0, %s178
      %s195 = sphi 0, %s179
    $region4: #{tpu_custom_call.1} parent=1 // loop_header_branch
      %16 = sbr.rel (%p14) target = $region8
    $region5: #{tpu_custom_call.1} parent=1 // loop_body
      %s18 = ssub.s32 %s13, 1
      %s19 = ssub.s32 %s13, 2
      %s20 = sadd.s32 %s13, 1
      %s21 = ssub.s32 %s13, %s20
      %p22 = scmp.eq.s32.totalorder %s21, 0
      %s24 = sadd.s32 %s23, 1
      %s25 = scalar_select %p22, %s23, %s24
      %p28 = pneg %p22
      %p29 = scmp.eq.s32.totalorder %s13, 1
      %p30 = por %p28, %p29
      %p31 = scmp.ne.s32.totalorder %s23, %s26
      %p32 = scmp.eq.s32.totalorder %s13, 0
      %p33 = por %p31, %p32
      %p34 = scmp.ne.s32.totalorder %s23, %s26
      %p35 = scmp.eq.s32.totalorder %s18, 1
      %p36 = por %p34, %p35
      %p37 = scmp.ne.s32.totalorder %s26, %s27
      %p38 = scmp.eq.s32.totalorder %s18, 0
      %p39 = por %p37, %p38
      %p40 = scmp.ne.s32.totalorder %s26, %s27
      %p41 = scmp.eq.s32.totalorder %s19, 1
      %p42 = por %p40, %p41
      %p44 = scmp.ne.s32.totalorder %s27, %s43
      %p45 = scmp.eq.s32.totalorder %s19, 0
      %p46 = por %p44, %p45
      %s48 = sadd.s32 %s47, 1
      %p51 = scmp.eq.s32.totalorder %s13, 1
      %p52 = scmp.ne.s32.totalorder %s47, %s49
      %p53 = scmp.eq.s32.totalorder %s13, 0
      %p54 = por %p52, %p53
      %p55 = scmp.ne.s32.totalorder %s47, %s49
      %p56 = scmp.eq.s32.totalorder %s18, 1
      %p57 = por %p55, %p56
      %p58 = scmp.ne.s32.totalorder %s49, %s50
      %p59 = scmp.eq.s32.totalorder %s18, 0
      %p60 = por %p58, %p59
      %p61 = scmp.ne.s32.totalorder %s49, %s50
      %p62 = scmp.eq.s32.totalorder %s19, 1
      %p63 = por %p61, %p62
      %p65 = scmp.ne.s32.totalorder %s50, %s64
      %p66 = scmp.eq.s32.totalorder %s19, 0
      %p67 = por %p65, %p66
      %s69 = sadd.s32 %s68, 1
      %p72 = scmp.eq.s32.totalorder %s13, 1
      %p73 = scmp.ne.s32.totalorder %s68, %s70
      %p74 = scmp.eq.s32.totalorder %s13, 0
      %p75 = por %p73, %p74
      %p76 = scmp.ne.s32.totalorder %s68, %s70
      %p77 = scmp.eq.s32.totalorder %s18, 1
      %p78 = por %p76, %p77
      %p79 = scmp.ne.s32.totalorder %s70, %s71
      %p80 = scmp.eq.s32.totalorder %s18, 0
      %p81 = por %p79, %p80
      %p82 = scmp.ne.s32.totalorder %s70, %s71
      %p83 = scmp.eq.s32.totalorder %s19, 1
      %p84 = por %p82, %p83
      %p86 = scmp.ne.s32.totalorder %s71, %s85
      %p87 = scmp.eq.s32.totalorder %s19, 0
      %p88 = por %p86, %p87
      %s90 = sadd.s32 %s89, 1
      %p93 = scmp.eq.s32.totalorder %s13, 1
      %p94 = scmp.ne.s32.totalorder %s89, %s91
      %p95 = scmp.eq.s32.totalorder %s13, 0
      %p96 = por %p94, %p95
      %p97 = scmp.ne.s32.totalorder %s89, %s91
      %p98 = scmp.eq.s32.totalorder %s18, 1
      %p99 = por %p97, %p98
      %p100 = scmp.ne.s32.totalorder %s91, %s92
      %p101 = scmp.eq.s32.totalorder %s18, 0
      %p102 = por %p100, %p101
      %p103 = scmp.ne.s32.totalorder %s91, %s92
      %p104 = scmp.eq.s32.totalorder %s19, 1
      %p105 = por %p103, %p104
      %p107 = scmp.ne.s32.totalorder %s92, %s106
      %p108 = scmp.eq.s32.totalorder %s19, 0
      %p109 = por %p107, %p108
      %s111 = sadd.s32 %s110, 1
      %p114 = scmp.eq.s32.totalorder %s13, 1
      %p115 = scmp.ne.s32.totalorder %s110, %s112
      %p116 = scmp.eq.s32.totalorder %s13, 0
      %p117 = por %p115, %p116
      %p118 = scmp.ne.s32.totalorder %s110, %s112
      %p119 = scmp.eq.s32.totalorder %s18, 1
      %p120 = por %p118, %p119
      %p121 = scmp.ne.s32.totalorder %s112, %s113
      %p122 = scmp.eq.s32.totalorder %s18, 0
      %p123 = por %p121, %p122
      %p124 = scmp.ne.s32.totalorder %s112, %s113
      %p125 = scmp.eq.s32.totalorder %s19, 1
      %p126 = por %p124, %p125
      %p128 = scmp.ne.s32.totalorder %s113, %s127
      %p129 = scmp.eq.s32.totalorder %s19, 0
      %p130 = por %p128, %p129
      %s132 = sadd.s32 %s131, 1
      %p135 = scmp.eq.s32.totalorder %s13, 1
      %p136 = scmp.ne.s32.totalorder %s131, %s133
      %p137 = scmp.eq.s32.totalorder %s13, 0
      %p138 = por %p136, %p137
      %p139 = scmp.ne.s32.totalorder %s131, %s133
      %p140 = scmp.eq.s32.totalorder %s18, 1
      %p141 = por %p139, %p140
      %p142 = scmp.ne.s32.totalorder %s133, %s134
      %p143 = scmp.eq.s32.totalorder %s18, 0
      %p144 = por %p142, %p143
      %p145 = scmp.ne.s32.totalorder %s133, %s134
      %p146 = scmp.eq.s32.totalorder %s19, 1
      %p147 = por %p145, %p146
      %p149 = scmp.ne.s32.totalorder %s134, %s148
      %p150 = scmp.eq.s32.totalorder %s19, 0
      %p151 = por %p149, %p150
      %s153 = sadd.s32 %s152, 1
      %p156 = scmp.eq.s32.totalorder %s13, 1
      %p157 = scmp.ne.s32.totalorder %s152, %s154
      %p158 = scmp.eq.s32.totalorder %s13, 0
      %p159 = por %p157, %p158
      %p160 = scmp.ne.s32.totalorder %s152, %s154
      %p161 = scmp.eq.s32.totalorder %s18, 1
      %p162 = por %p160, %p161
      %p163 = scmp.ne.s32.totalorder %s154, %s155
      %p164 = scmp.eq.s32.totalorder %s18, 0
      %p165 = por %p163, %p164
      %p166 = scmp.ne.s32.totalorder %s154, %s155
      %p167 = scmp.eq.s32.totalorder %s19, 1
      %p168 = por %p166, %p167
      %p170 = scmp.ne.s32.totalorder %s155, %s169
      %p171 = scmp.eq.s32.totalorder %s19, 0
      %p172 = por %p170, %p171
      %s173 = ssub.s32 %s13, %s20
      %p174 = scmp.eq.s32.totalorder %s173, 0
      %s176 = sadd.s32 %s175, 1
      %s177 = scalar_select %p174, %s175, %s176
      %p180 = pneg %p174
      %p181 = scmp.eq.s32.totalorder %s13, 1
      %p182 = por %p180, %p181
      %p183 = scmp.ne.s32.totalorder %s175, %s178
      %p184 = scmp.eq.s32.totalorder %s13, 0
      %p185 = por %p183, %p184
      %p186 = scmp.ne.s32.totalorder %s175, %s178
      %p187 = scmp.eq.s32.totalorder %s18, 1
      %p188 = por %p186, %p187
      %p189 = scmp.ne.s32.totalorder %s178, %s179
      %p190 = scmp.eq.s32.totalorder %s18, 0
      %p191 = por %p189, %p190
      %p192 = scmp.ne.s32.totalorder %s178, %s179
      %p193 = scmp.eq.s32.totalorder %s19, 1
      %p194 = por %p192, %p193
      %p196 = scmp.ne.s32.totalorder %s179, %s195
      %p197 = scmp.eq.s32.totalorder %s19, 0
      %p198 = por %p196, %p197
      %p199 = scmp.le.s32.totalorder 1, %s13
      %p200 = scmp.lt.s32.totalorder %s13, 3
      %p201 = pnand %p199, %p200
      %p202 = pneg %p201
      // Predicated region
      $region9: #{tpu_custom_call.1} parent=5 // pred_check
        _
      $region10: #{tpu_custom_call.1} parent=5 // pred_check_branch
        %204 = sbr.rel (%p201) target = $region12
      $region11: #{tpu_custom_call.1} parent=5 // pred_region
        %s205 = ssub.s32 %s13, 1
        // Predicated region
        $region13: #{tpu_custom_call.1} parent=11 // pred_check
          %p206 = pneg %p60
        $region14: #{tpu_custom_call.1} parent=11 // pred_check_branch
          %208 = sbr.rel (%p206) target = $region16
        $region15: #{tpu_custom_call.1} parent=11 // pred_region
          _
        $region16: #{tpu_custom_call.1} parent=11 // pred_fallthru
          _
        // Predicated region
        $region17: #{tpu_custom_call.1} parent=11 // pred_check
          %p209 = pneg %p81
        $region18: #{tpu_custom_call.1} parent=11 // pred_check_branch
          %211 = sbr.rel (%p209) target = $region20
        $region19: #{tpu_custom_call.1} parent=11 // pred_region
          _
        $region20: #{tpu_custom_call.1} parent=11 // pred_fallthru
          _
        // Predicated region
        $region21: #{tpu_custom_call.1} parent=11 // pred_check
          %p212 = pneg %p102
        $region22: #{tpu_custom_call.1} parent=11 // pred_check_branch
          %214 = sbr.rel (%p212) target = $region24
        $region23: #{tpu_custom_call.1} parent=11 // pred_region
          _
        $region24: #{tpu_custom_call.1} parent=11 // pred_fallthru
          _
        // Predicated region
        $region25: #{tpu_custom_call.1} parent=11 // pred_check
          %p215 = pneg %p123
        $region26: #{tpu_custom_call.1} parent=11 // pred_check_branch
          %217 = sbr.rel (%p215) target = $region28
        $region27: #{tpu_custom_call.1} parent=11 // pred_region
          _
        $region28: #{tpu_custom_call.1} parent=11 // pred_fallthru
          _
        // Predicated region
        $region29: #{tpu_custom_call.1} parent=11 // pred_check
          %p218 = pneg %p144
        $region30: #{tpu_custom_call.1} parent=11 // pred_check_branch
          %220 = sbr.rel (%p218) target = $region32
        $region31: #{tpu_custom_call.1} parent=11 // pred_region
          _
        $region32: #{tpu_custom_call.1} parent=11 // pred_fallthru
          _
        // Predicated region
        $region33: #{tpu_custom_call.1} parent=11 // pred_check
          %p221 = pneg %p165
        $region34: #{tpu_custom_call.1} parent=11 // pred_check_branch
          %223 = sbr.rel (%p221) target = $region36
        $region35: #{tpu_custom_call.1} parent=11 // pred_region
          _
        $region36: #{tpu_custom_call.1} parent=11 // pred_fallthru
          _
      $region12: #{tpu_custom_call.1} parent=5 // pred_fallthru
        _
      %p224 = scmp.lt.s32.totalorder %s13, 2
      // Predicated region
      $region37: #{tpu_custom_call.1} parent=5 // pred_check
        %p225 = pneg %p224
      $region38: #{tpu_custom_call.1} parent=5 // pred_check_branch
        %227 = sbr.rel (%p225) target = $region40
      $region39: #{tpu_custom_call.1} parent=5 // pred_region
        // Predicated region
        $region41: #{tpu_custom_call.1} parent=39 // pred_check
          %p228 = pneg %p33
        $region42: #{tpu_custom_call.1} parent=39 // pred_check_branch
          %230 = sbr.rel (%p228) target = $region44
        $region43: #{tpu_custom_call.1} parent=39 // pred_region
          %s231 = smul.u32 64, %s13
          %s232 = ssub.s32 125, %s231
          %p233 = scmp.lt.s32.totalorder %s232, 64
          %s234 = scalar_select %p233, %s232, 64
          %s235 = smul.u32 128, %s234
          %p236 = scmp.lt.s32.totalorder %s231, 124
          %s237 = scalar_select %p236, %s231, 124
          %s238 = smul.addr %s237, 8
          %s239 = scalar_lea.vmem %s0, %s238
          %s240 = smul.u32 64, %s13
          %s241 = ssub.s32 125, %s240
          %p242 = scmp.lt.s32.totalorder %s241, 64
          %s243 = scalar_select %p242, %s241, 64
          %s244 = smul.u32 128, %s243
        $region44: #{tpu_custom_call.1} parent=39 // pred_fallthru
          _
      $region40: #{tpu_custom_call.1} parent=5 // pred_fallthru
        _
      %p245 = scmp.le.s32.totalorder 1, %s13
      %p246 = scmp.lt.s32.totalorder %s13, 3
      %p247 = pnand %p245, %p246
      %p248 = pneg %p247
      // Predicated region
      $region45: #{tpu_custom_call.1} parent=5 // pred_check
        _
      $region46: #{tpu_custom_call.1} parent=5 // pred_check_branch
        %250 = sbr.rel (%p247) target = $region48
      $region47: #{tpu_custom_call.1} parent=5 // pred_region
        %s251 = ssub.s32 %s13, 1
        %s252 = smul.u32 64, %s18
        %s253 = ssub.s32 125, %s252
        %p254 = scmp.lt.s32.totalorder %s253, 64
        %s255 = scalar_select %p254, %s253, 64
        %s256 = smul.u32 128, %s255
        %p257 = scmp.lt.s32.totalorder %s252, 124
        %s258 = scalar_select %p257, %s252, 124
        %s259 = smul.addr %s258, 8
        %s260 = scalar_lea.vmem %s0, %s259
        %p261 = pneg %p39
        %p262 = pneg %p36
        %p263 = pneg %p60
        %p264 = pneg %p57
        %p265 = pneg %p81
        %p266 = pneg %p78
        %p267 = pneg %p102
        %p268 = pneg %p99
        %p269 = pneg %p123
        %p270 = pneg %p120
        %p271 = pneg %p144
        %p272 = pneg %p141
        %p273 = pneg %p165
        %p274 = pneg %p162
        %p275 = pneg %p191
        %p276 = pneg %p188
        %s277 = sand.u32 %s178, 1
        %s278 = sand.u32 %s178, 1
        %s279 = smul.addr %s278, 512
        %s280 = scalar_lea.vmem [#allocation2], %s279
        %s281 = smul.u32 64, %s18
        %s282 = ssub.s32 125, %s281
        %p283 = scmp.lt.s32.totalorder %s282, 64
        %s284 = scalar_select %p283, %s282, 64
        %s285 = smul.u32 128, %s284
        %p286 = scmp.lt.s32.totalorder %s281, 124
        %s287 = scalar_select %p286, %s281, 124
        %s288 = smul.addr %s287, 8
        %s289 = scalar_lea.vmem %s0, %s288
        %s290 = smul.u32 64, %s18
        %s291 = ssub.s32 125, %s290
        %p292 = scmp.lt.s32.totalorder %s291, 64
        %s293 = scalar_select %p292, %s291, 64
        %s294 = smul.u32 128, %s293
        %s295 = smul.u32 64, %s18
        %s296 = ssub.s32 125, %s295
        %p297 = scmp.lt.s32.totalorder %s296, 64
        %s298 = scalar_select %p297, %s296, 64
        %s299 = smul.u32 128, %s298
        %v300 = vld [vmem:[%s289] sm:$0xff]
        %v301 = vld [vmem:[%s289 + $0x8] sm:$0xff]
        %v302 = vld [vmem:[%s289 + $0x10] sm:$0xff]
        %v303 = vld [vmem:[%s289 + $0x18] sm:$0xff]
        %v304 = vld [vmem:[%s289 + $0x20] sm:$0xff]
        %v305 = vld [vmem:[%s289 + $0x28] sm:$0xff]
        %v306 = vld [vmem:[%s289 + $0x30] sm:$0xff]
        %v307 = vld [vmem:[%s289 + $0x38] sm:$0xff]
        %v308 = vld [vmem:[%s289 + $0x40] sm:$0xff]
        %v309 = vld [vmem:[%s289 + $0x48] sm:$0xff]
        %v310 = vld [vmem:[%s289 + $0x50] sm:$0xff]
        %v311 = vld [vmem:[%s289 + $0x58] sm:$0xff]
        %v312 = vld [vmem:[%s289 + $0x60] sm:$0xff]
        %v313 = vld [vmem:[%s289 + $0x68] sm:$0xff]
        %v314 = vld [vmem:[%s289 + $0x70] sm:$0xff]
        %v315 = vld [vmem:[%s289 + $0x78] sm:$0xff]
        %v316 = vld [vmem:[%s289 + $0x80] sm:$0xff]
        %v317 = vld [vmem:[%s289 + $0x88] sm:$0xff]
        %v318 = vld [vmem:[%s289 + $0x90] sm:$0xff]
        %v319 = vld [vmem:[%s289 + $0x98] sm:$0xff]
        %v320 = vld [vmem:[%s289 + $0xa0] sm:$0xff]
        %v321 = vld [vmem:[%s289 + $0xa8] sm:$0xff]
        %v322 = vld [vmem:[%s289 + $0xb0] sm:$0xff]
        %v323 = vld [vmem:[%s289 + $0xb8] sm:$0xff]
        %v324 = vld [vmem:[%s289 + $0xc0] sm:$0xff]
        %v325 = vld [vmem:[%s289 + $0xc8] sm:$0xff]
        %v326 = vld [vmem:[%s289 + $0xd0] sm:$0xff]
        %v327 = vld [vmem:[%s289 + $0xd8] sm:$0xff]
        %v328 = vld [vmem:[%s289 + $0xe0] sm:$0xff]
        %v329 = vld [vmem:[%s289 + $0xe8] sm:$0xff]
        %v330 = vld [vmem:[%s289 + $0xf0] sm:$0xff]
        %v331 = vld [vmem:[%s289 + $0xf8] sm:$0xff]
        %v332 = vld [vmem:[%s289 + $0x100] sm:$0xff]
        %v333 = vld [vmem:[%s289 + $0x108] sm:$0xff]
        %v334 = vld [vmem:[%s289 + $0x110] sm:$0xff]
        %v335 = vld [vmem:[%s289 + $0x118] sm:$0xff]
        %v336 = vld [vmem:[%s289 + $0x120] sm:$0xff]
        %v337 = vld [vmem:[%s289 + $0x128] sm:$0xff]
        %v338 = vld [vmem:[%s289 + $0x130] sm:$0xff]
        %v339 = vld [vmem:[%s289 + $0x138] sm:$0xff]
        %v340 = vld [vmem:[%s289 + $0x140] sm:$0xff]
        %v341 = vld [vmem:[%s289 + $0x148] sm:$0xff]
        %v342 = vld [vmem:[%s289 + $0x150] sm:$0xff]
        %v343 = vld [vmem:[%s289 + $0x158] sm:$0xff]
        %v344 = vld [vmem:[%s289 + $0x160] sm:$0xff]
        %v345 = vld [vmem:[%s289 + $0x168] sm:$0xff]
        %v346 = vld [vmem:[%s289 + $0x170] sm:$0xff]
        %v347 = vld [vmem:[%s289 + $0x178] sm:$0xff]
        %v348 = vld [vmem:[%s289 + $0x180] sm:$0xff]
        %v349 = vld [vmem:[%s289 + $0x188] sm:$0xff]
        %v350 = vld [vmem:[%s289 + $0x190] sm:$0xff]
        %v351 = vld [vmem:[%s289 + $0x198] sm:$0xff]
        %v352 = vld [vmem:[%s289 + $0x1a0] sm:$0xff]
        %v353 = vld [vmem:[%s289 + $0x1a8] sm:$0xff]
        %v354 = vld [vmem:[%s289 + $0x1b0] sm:$0xff]
        %v355 = vld [vmem:[%s289 + $0x1b8] sm:$0xff]
        %v356 = vld [vmem:[%s289 + $0x1c0] sm:$0xff]
        %v357 = vld [vmem:[%s289 + $0x1c8] sm:$0xff]
        %v358 = vld [vmem:[%s289 + $0x1d0] sm:$0xff]
        %v359 = vld [vmem:[%s289 + $0x1d8] sm:$0xff]
        %v360 = vld [vmem:[%s289 + $0x1e0] sm:$0xff]
        %v361 = vld [vmem:[%s289 + $0x1e8] sm:$0xff]
        %v362 = vld [vmem:[%s289 + $0x1f0] sm:$0xff]
        %v363 = vld [vmem:[%s289 + $0x1f8] sm:$0xff]
        %v364 = vld [vmem:[%s1] sm:$0xff]
        %v365 = vld [vmem:[%s1 + $0x8] sm:$0xff]
        %v366 = vld [vmem:[%s1 + $0x10] sm:$0xff]
        %v367 = vld [vmem:[%s1 + $0x18] sm:$0xff]
        %v368 = vld [vmem:[%s2] sm:$0xff]
        %v369 = vld [vmem:[%s2 + $0x8] sm:$0xff]
        %v370 = vld [vmem:[%s2 + $0x10] sm:$0xff]
        %v371 = vld [vmem:[%s2 + $0x18] sm:$0xff]
        %373 = vset.pattern.permute.xlu0 0
        %374 = vperm.xlu0 %373, %v368
        %v375 = vpop.permute.xlu0 %374
        %378 = vset.pattern.permute.xlu0 0
        %379 = vperm.xlu0 %378, %v369
        %v380 = vpop.permute.xlu0 %379
        %383 = vset.pattern.permute.xlu0 0
        %384 = vperm.xlu0 %383, %v370
        %v385 = vpop.permute.xlu0 %384
        %388 = vset.pattern.permute.xlu0 0
        %389 = vperm.xlu0 %388, %v371
        %v390 = vpop.permute.xlu0 %389
        %vm392 = vcmask 130048
        %v394 = vsel %vm392, %v364, 0
        %v397 = vsel %vm392, %v365, 0
        %v400 = vsel %vm392, %v366, 0
        %v403 = vsel %vm392, %v367, 0
        %v406 = vsel %vm392, %v300, 0
        %v409 = vsel %vm392, %v301, 0
        %v412 = vsel %vm392, %v302, 0
        %v415 = vsel %vm392, %v303, 0
        %v418 = vsel %vm392, %v304, 0
        %v421 = vsel %vm392, %v305, 0
        %v424 = vsel %vm392, %v306, 0
        %v427 = vsel %vm392, %v307, 0
        %v430 = vsel %vm392, %v308, 0
        %v433 = vsel %vm392, %v309, 0
        %v436 = vsel %vm392, %v310, 0
        %v439 = vsel %vm392, %v311, 0
        %v442 = vsel %vm392, %v312, 0
        %v445 = vsel %vm392, %v313, 0
        %v448 = vsel %vm392, %v314, 0
        %v451 = vsel %vm392, %v315, 0
        %v454 = vsel %vm392, %v316, 0
        %v457 = vsel %vm392, %v317, 0
        %v460 = vsel %vm392, %v318, 0
        %v463 = vsel %vm392, %v319, 0
        %v466 = vsel %vm392, %v320, 0
        %v469 = vsel %vm392, %v321, 0
        %v472 = vsel %vm392, %v322, 0
        %v475 = vsel %vm392, %v323, 0
        %v478 = vsel %vm392, %v324, 0
        %v481 = vsel %vm392, %v325, 0
        %v484 = vsel %vm392, %v326, 0
        %v487 = vsel %vm392, %v327, 0
        %v490 = vsel %vm392, %v328, 0
        %v493 = vsel %vm392, %v329, 0
        %v496 = vsel %vm392, %v330, 0
        %v499 = vsel %vm392, %v331, 0
        %v502 = vsel %vm392, %v332, 0
        %v505 = vsel %vm392, %v333, 0
        %v508 = vsel %vm392, %v334, 0
        %v511 = vsel %vm392, %v335, 0
        %v514 = vsel %vm392, %v336, 0
        %v517 = vsel %vm392, %v337, 0
        %v520 = vsel %vm392, %v338, 0
        %v523 = vsel %vm392, %v339, 0
        %v526 = vsel %vm392, %v340, 0
        %v529 = vsel %vm392, %v341, 0
        %v532 = vsel %vm392, %v342, 0
        %v535 = vsel %vm392, %v343, 0
        %v538 = vsel %vm392, %v344, 0
        %v541 = vsel %vm392, %v345, 0
        %v544 = vsel %vm392, %v346, 0
        %v547 = vsel %vm392, %v347, 0
        %v550 = vsel %vm392, %v348, 0
        %v553 = vsel %vm392, %v349, 0
        %v556 = vsel %vm392, %v350, 0
        %v559 = vsel %vm392, %v351, 0
        %v562 = vsel %vm392, %v352, 0
        %v565 = vsel %vm392, %v353, 0
        %v568 = vsel %vm392, %v354, 0
        %v571 = vsel %vm392, %v355, 0
        %v574 = vsel %vm392, %v356, 0
        %v577 = vsel %vm392, %v357, 0
        %v580 = vsel %vm392, %v358, 0
        %v583 = vsel %vm392, %v359, 0
        %v586 = vsel %vm392, %v360, 0
        %v589 = vsel %vm392, %v361, 0
        %v592 = vsel %vm392, %v362, 0
        %v595 = vsel %vm392, %v363, 0
        %597 = vmatprep.subr.mxu0 0.0
        %598 = vmatpush1.xpose.msra.mxu0 %v406
        %599 = vmatprep.subr.mxu0 0.0
        %600 = vmatpush1.xpose.msra.mxu0 %v409
        %601 = vmatprep.subr.mxu0 0.0
        %602 = vmatpush1.xpose.msra.mxu0 %v412
        %603 = vmatprep.subr.mxu0 0.0
        %604 = vmatpush1.xpose.msra.mxu0 %v415
        %605 = vmatprep.subr.mxu0 0.0
        %606 = vmatpush1.xpose.msra.mxu0 %v418
        %607 = vmatprep.subr.mxu0 0.0
        %608 = vmatpush1.xpose.msra.mxu0 %v421
        %609 = vmatprep.subr.mxu0 0.0
        %610 = vmatpush1.xpose.msra.mxu0 %v424
        %611 = vmatprep.subr.mxu0 0.0
        %612 = vmatpush1.xpose.msra.mxu0 %v427
        %613 = vmatprep.subr.mxu0 0.0
        %614 = vmatpush1.xpose.msra.mxu0 %v430
        %615 = vmatprep.subr.mxu0 0.0
        %616 = vmatpush1.xpose.msra.mxu0 %v433
        %617 = vmatprep.subr.mxu0 0.0
        %618 = vmatpush1.xpose.msra.mxu0 %v436
        %619 = vmatprep.subr.mxu0 0.0
        %620 = vmatpush1.xpose.msra.mxu0 %v439
        %621 = vmatprep.subr.mxu0 0.0
        %622 = vmatpush1.xpose.msra.mxu0 %v442
        %623 = vmatprep.subr.mxu0 0.0
        %624 = vmatpush1.xpose.msra.mxu0 %v445
        %625 = vmatprep.subr.mxu0 0.0
        %626 = vmatpush1.xpose.msra.mxu0 %v448
        %627 = vmatprep.subr.mxu0 0.0
        %628 = vmatpush1.xpose.msra.mxu0 %v451
        %629 = vmatprep.subr.mxu0 0.0
        %630 = vmatpush1.xpose.msra.mxu0 %v454
        %631 = vmatprep.subr.mxu0 0.0
        %632 = vmatpush1.xpose.msra.mxu0 %v457
        %633 = vmatprep.subr.mxu0 0.0
        %634 = vmatpush1.xpose.msra.mxu0 %v460
        %635 = vmatprep.subr.mxu0 0.0
        %636 = vmatpush1.xpose.msra.mxu0 %v463
        %637 = vmatprep.subr.mxu0 0.0
        %638 = vmatpush1.xpose.msra.mxu0 %v466
        %639 = vmatprep.subr.mxu0 0.0
        %640 = vmatpush1.xpose.msra.mxu0 %v469
        %641 = vmatprep.subr.mxu0 0.0
        %642 = vmatpush1.xpose.msra.mxu0 %v472
        %643 = vmatprep.subr.mxu0 0.0
        %644 = vmatpush1.xpose.msra.mxu0 %v475
        %645 = vmatprep.subr.mxu0 0.0
        %646 = vmatpush1.xpose.msra.mxu0 %v478
        %647 = vmatprep.subr.mxu0 0.0
        %648 = vmatpush1.xpose.msra.mxu0 %v481
        %649 = vmatprep.subr.mxu0 0.0
        %650 = vmatpush1.xpose.msra.mxu0 %v484
        %651 = vmatprep.subr.mxu0 0.0
        %652 = vmatpush1.xpose.msra.mxu0 %v487
        %653 = vmatprep.subr.mxu0 0.0
        %654 = vmatpush1.xpose.msra.mxu0 %v490
        %655 = vmatprep.subr.mxu0 0.0
        %656 = vmatpush1.xpose.msra.mxu0 %v493
        %657 = vmatprep.subr.mxu0 0.0
        %658 = vmatpush1.xpose.msra.mxu0 %v496
        %659 = vmatprep.subr.mxu0 0.0
        %660 = vmatpush1.xpose.msra.mxu0 %v499
        %661 = vmatprep.mubr.f32.mxu0 0.0
        %662 = vmatmul.mubr.f32.gmra.mrb[0].mxu0 %v394
        %v663 = vpop.f32.mrb[0].mxu0
        %v664 = vadd.f32 %v375, %v663
        %v665 = vpop.f32.mrb[0].mxu0
        %v666 = vadd.f32 %v375, %v665
        %667 = vmatprep.mubr.f32.mxu0 0.0
        %668 = vmatmul.mubr.f32.gmra.mrb[0].mxu0 %v397
        %v669 = vpop.f32.mrb[0].mxu0
        %v670 = vadd.f32 %v380, %v669
        %v671 = vpop.f32.mrb[0].mxu0
        %v672 = vadd.f32 %v380, %v671
        %673 = vmatprep.mubr.f32.mxu0 0.0
        %674 = vmatmul.mubr.f32.gmra.mrb[0].mxu0 %v400
        %v675 = vpop.f32.mrb[0].mxu0
        %v676 = vadd.f32 %v385, %v675
        %v677 = vpop.f32.mrb[0].mxu0
        %v678 = vadd.f32 %v385, %v677
        %679 = vmatprep.mubr.f32.mxu0 0.0
        %680 = vmatmul.mubr.f32.gmra.mrb[0].mxu0 %v403
        %v681 = vpop.f32.mrb[0].mxu0
        %v682 = vadd.f32 %v390, %v681
        %v683 = vpop.f32.mrb[0].mxu0
        %v684 = vadd.f32 %v390, %v683
        %685 = vdwg.mxu0
        %686 = vmatprep.subr.mxu0 0.0
        %687 = vmatpush1.xpose.msra.mxu0 %v502
        %688 = vmatprep.subr.mxu0 0.0
        %689 = vmatpush1.xpose.msra.mxu0 %v505
        %690 = vmatprep.subr.mxu0 0.0
        %691 = vmatpush1.xpose.msra.mxu0 %v508
        %692 = vmatprep.subr.mxu0 0.0
        %693 = vmatpush1.xpose.msra.mxu0 %v511
        %694 = vmatprep.subr.mxu0 0.0
        %695 = vmatpush1.xpose.msra.mxu0 %v514
        %696 = vmatprep.subr.mxu0 0.0
        %697 = vmatpush1.xpose.msra.mxu0 %v517
        %698 = vmatprep.subr.mxu0 0.0
        %699 = vmatpush1.xpose.msra.mxu0 %v520
        %700 = vmatprep.subr.mxu0 0.0
        %701 = vmatpush1.xpose.msra.mxu0 %v523
        %702 = vmatprep.subr.mxu0 0.0
        %703 = vmatpush1.xpose.msra.mxu0 %v526
        %704 = vmatprep.subr.mxu0 0.0
        %705 = vmatpush1.xpose.msra.mxu0 %v529
        %706 = vmatprep.subr.mxu0 0.0
        %707 = vmatpush1.xpose.msra.mxu0 %v532
        %708 = vmatprep.subr.mxu0 0.0
        %709 = vmatpush1.xpose.msra.mxu0 %v535
        %710 = vmatprep.subr.mxu0 0.0
        %711 = vmatpush1.xpose.msra.mxu0 %v538
        %712 = vmatprep.subr.mxu0 0.0
        %713 = vmatpush1.xpose.msra.mxu0 %v541
        %714 = vmatprep.subr.mxu0 0.0
        %715 = vmatpush1.xpose.msra.mxu0 %v544
        %716 = vmatprep.subr.mxu0 0.0
        %717 = vmatpush1.xpose.msra.mxu0 %v547
        %718 = vmatprep.subr.mxu0 0.0
        %719 = vmatpush1.xpose.msra.mxu0 %v550
        %720 = vmatprep.subr.mxu0 0.0
        %721 = vmatpush1.xpose.msra.mxu0 %v553
        %722 = vmatprep.subr.mxu0 0.0
        %723 = vmatpush1.xpose.msra.mxu0 %v556
        %724 = vmatprep.subr.mxu0 0.0
        %725 = vmatpush1.xpose.msra.mxu0 %v559
        %726 = vmatprep.subr.mxu0 0.0
        %727 = vmatpush1.xpose.msra.mxu0 %v562
        %728 = vmatprep.subr.mxu0 0.0
        %729 = vmatpush1.xpose.msra.mxu0 %v565
        %730 = vmatprep.subr.mxu0 0.0
        %731 = vmatpush1.xpose.msra.mxu0 %v568
        %732 = vmatprep.subr.mxu0 0.0
        %733 = vmatpush1.xpose.msra.mxu0 %v571
        %734 = vmatprep.subr.mxu0 0.0
        %735 = vmatpush1.xpose.msra.mxu0 %v574
        %736 = vmatprep.subr.mxu0 0.0
        %737 = vmatpush1.xpose.msra.mxu0 %v577
        %738 = vmatprep.subr.mxu0 0.0
        %739 = vmatpush1.xpose.msra.mxu0 %v580
        %740 = vmatprep.subr.mxu0 0.0
        %741 = vmatpush1.xpose.msra.mxu0 %v583
        %742 = vmatprep.subr.mxu0 0.0
        %743 = vmatpush1.xpose.msra.mxu0 %v586
        %744 = vmatprep.subr.mxu0 0.0
        %745 = vmatpush1.xpose.msra.mxu0 %v589
        %746 = vmatprep.subr.mxu0 0.0
        %747 = vmatpush1.xpose.msra.mxu0 %v592
        %748 = vmatprep.subr.mxu0 0.0
        %749 = vmatpush1.xpose.msra.mxu0 %v595
        %750 = vmatprep.mubr.f32.mxu0 0.0
        %751 = vmatmul.mubr.f32.gmra.mrb[0].mxu0 %v394
        %v752 = vpop.f32.mrb[0].mxu0
        %v753 = vadd.f32 %v375, %v752
        %v754 = vpop.f32.mrb[0].mxu0
        %v755 = vadd.f32 %v375, %v754
        %756 = vmatprep.mubr.f32.mxu0 0.0
        %757 = vmatmul.mubr.f32.gmra.mrb[0].mxu0 %v397
        %v758 = vpop.f32.mrb[0].mxu0
        %v759 = vadd.f32 %v380, %v758
        %v760 = vpop.f32.mrb[0].mxu0
        %v761 = vadd.f32 %v380, %v760
        %762 = vmatprep.mubr.f32.mxu0 0.0
        %763 = vmatmul.mubr.f32.gmra.mrb[0].mxu0 %v400
        %v764 = vpop.f32.mrb[0].mxu0
        %v765 = vadd.f32 %v385, %v764
        %v766 = vpop.f32.mrb[0].mxu0
        %v767 = vadd.f32 %v385, %v766
        %768 = vmatprep.mubr.f32.mxu0 0.0
        %769 = vmatmul.mubr.f32.gmra.mrb[0].mxu0 %v403
        %v770 = vpop.f32.mrb[0].mxu0
        %v771 = vadd.f32 %v390, %v770
        %v772 = vpop.f32.mrb[0].mxu0
        %v773 = vadd.f32 %v390, %v772
        %774 = vdwg.mxu0
        %v775 = vmax.f32 %v664, 0.0
        %v776 = vmax.f32 %v666, 0.0
        %v777 = vmax.f32 %v753, 0.0
        %v778 = vmax.f32 %v755, 0.0
        %v779 = vmax.f32 %v670, 0.0
        %v780 = vmax.f32 %v672, 0.0
        %v781 = vmax.f32 %v759, 0.0
        %v782 = vmax.f32 %v761, 0.0
        %v783 = vmax.f32 %v676, 0.0
        %v784 = vmax.f32 %v678, 0.0
        %v785 = vmax.f32 %v765, 0.0
        %v786 = vmax.f32 %v767, 0.0
        %v787 = vmax.f32 %v682, 0.0
        %v788 = vmax.f32 %v684, 0.0
        %v789 = vmax.f32 %v771, 0.0
        %v790 = vmax.f32 %v773, 0.0
        %v791 = vld [vmem:[%s3] sm:$0xff]
        %v792 = vld [vmem:[%s3 + $0x8] sm:$0xff]
        %v793 = vld [vmem:[%s3 + $0x10] sm:$0xff]
        %v794 = vld [vmem:[%s3 + $0x18] sm:$0xff]
        %v795 = vld [vmem:[%s4] sm:$0xff]
        %v796 = vld [vmem:[%s4 + $0x8] sm:$0xff]
        %v797 = vld [vmem:[%s4 + $0x10] sm:$0xff]
        %v798 = vld [vmem:[%s4 + $0x18] sm:$0xff]
        %800 = vset.pattern.permute.xlu0 0
        %801 = vperm.xlu0 %800, %v795
        %v802 = vpop.permute.xlu0 %801
        %805 = vset.pattern.permute.xlu0 0
        %806 = vperm.xlu0 %805, %v796
        %v807 = vpop.permute.xlu0 %806
        %810 = vset.pattern.permute.xlu0 0
        %811 = vperm.xlu0 %810, %v797
        %v812 = vpop.permute.xlu0 %811
        %815 = vset.pattern.permute.xlu0 0
        %816 = vperm.xlu0 %815, %v798
        %v817 = vpop.permute.xlu0 %816
        %vm819 = vcmask 261120
        %v821 = vsel %vm819, %v791, 0
        %v824 = vsel %vm819, %v792, 0
        %v827 = vsel %vm819, %v793, 0
        %v830 = vsel %vm819, %v794, 0
        %832 = vmatprep.subr.mxu0 %v776
        %833 = vmatpush1.msra.mxu0 %v775
        %834 = vmatprep.subr.mxu0 %v780
        %835 = vmatpush1.msra.mxu0 %v779
        %836 = vmatprep.subr.mxu0 %v784
        %837 = vmatpush1.msra.mxu0 %v783
        %838 = vmatprep.subr.mxu0 %v788
        %839 = vmatpush1.msra.mxu0 %v787
        %840 = vmatprep.subr.mxu0 0.0
        %841 = vmatpush1.msra.mxu0 0.0
        %842 = vmatprep.subr.mxu0 0.0
        %843 = vmatpush1.msra.mxu0 0.0
        %844 = vmatprep.subr.mxu0 0.0
        %845 = vmatpush1.msra.mxu0 0.0
        %846 = vmatprep.subr.mxu0 0.0
        %847 = vmatpush1.msra.mxu0 0.0
        %848 = vmatprep.subr.mxu0 0.0
        %849 = vmatpush1.msra.mxu0 0.0
        %850 = vmatprep.subr.mxu0 0.0
        %851 = vmatpush1.msra.mxu0 0.0
        %852 = vmatprep.subr.mxu0 0.0
        %853 = vmatpush1.msra.mxu0 0.0
        %854 = vmatprep.subr.mxu0 0.0
        %855 = vmatpush1.msra.mxu0 0.0
        %856 = vmatprep.subr.mxu0 0.0
        %857 = vmatpush1.msra.mxu0 0.0
        %858 = vmatprep.subr.mxu0 0.0
        %859 = vmatpush1.msra.mxu0 0.0
        %860 = vmatprep.subr.mxu0 0.0
        %861 = vmatpush1.msra.mxu0 0.0
        %862 = vmatprep.subr.mxu0 0.0
        %863 = vmatpush1.msra.mxu0 0.0
        %864 = vmatprep.subr.mxu0 0.0
        %865 = vmatpush1.msra.mxu0 0.0
        %866 = vmatprep.subr.mxu0 0.0
        %867 = vmatpush1.msra.mxu0 0.0
        %868 = vmatprep.subr.mxu0 0.0
        %869 = vmatpush1.msra.mxu0 0.0
        %870 = vmatprep.subr.mxu0 0.0
        %871 = vmatpush1.msra.mxu0 0.0
        %872 = vmatprep.subr.mxu0 0.0
        %873 = vmatpush1.msra.mxu0 0.0
        %874 = vmatprep.subr.mxu0 0.0
        %875 = vmatpush1.msra.mxu0 0.0
        %876 = vmatprep.subr.mxu0 0.0
        %877 = vmatpush1.msra.mxu0 0.0
        %878 = vmatprep.subr.mxu0 0.0
        %879 = vmatpush1.msra.mxu0 0.0
        %880 = vmatprep.subr.mxu0 0.0
        %881 = vmatpush1.msra.mxu0 0.0
        %882 = vmatprep.subr.mxu0 0.0
        %883 = vmatpush1.msra.mxu0 0.0
        %884 = vmatprep.subr.mxu0 0.0
        %885 = vmatpush1.msra.mxu0 0.0
        %886 = vmatprep.subr.mxu0 0.0
        %887 = vmatpush1.msra.mxu0 0.0
        %888 = vmatprep.subr.mxu0 0.0
        %889 = vmatpush1.msra.mxu0 0.0
        %890 = vmatprep.subr.mxu0 0.0
        %891 = vmatpush1.msra.mxu0 0.0
        %892 = vmatprep.subr.mxu0 0.0
        %893 = vmatpush1.msra.mxu0 0.0
        %894 = vmatprep.subr.mxu0 0.0
        %895 = vmatpush1.msra.mxu0 0.0
        %896 = vmatprep.mubr.f32.mxu0 0.0
        %897 = vmatmul.mubr.f32.gmra.mrb[0].mxu0 %v821
        %v898 = vpop.f32.mrb[0].mxu0
        %v899 = vadd.f32 %v802, %v898
        %v900 = vpop.f32.mrb[0].mxu0
        %v901 = vadd.f32 %v802, %v900
        %902 = vmatprep.mubr.f32.mxu0 0.0
        %903 = vmatmul.mubr.f32.gmra.mrb[0].mxu0 %v824
        %v904 = vpop.f32.mrb[0].mxu0
        %v905 = vadd.f32 %v807, %v904
        %v906 = vpop.f32.mrb[0].mxu0
        %v907 = vadd.f32 %v807, %v906
        %908 = vmatprep.mubr.f32.mxu0 0.0
        %909 = vmatmul.mubr.f32.gmra.mrb[0].mxu0 %v827
        %v910 = vpop.f32.mrb[0].mxu0
        %v911 = vadd.f32 %v812, %v910
        %v912 = vpop.f32.mrb[0].mxu0
        %v913 = vadd.f32 %v812, %v912
        %914 = vmatprep.mubr.f32.mxu0 0.0
        %915 = vmatmul.mubr.f32.gmra.mrb[0].mxu0 %v830
        %v916 = vpop.f32.mrb[0].mxu0
        %v917 = vadd.f32 %v817, %v916
        %v918 = vpop.f32.mrb[0].mxu0
        %v919 = vadd.f32 %v817, %v918
        %920 = vdwg.mxu0
        %921 = vmatprep.subr.mxu0 %v778
        %922 = vmatpush1.msra.mxu0 %v777
        %923 = vmatprep.subr.mxu0 %v782
        %924 = vmatpush1.msra.mxu0 %v781
        %925 = vmatprep.subr.mxu0 %v786
        %926 = vmatpush1.msra.mxu0 %v785
        %927 = vmatprep.subr.mxu0 %v790
        %928 = vmatpush1.msra.mxu0 %v789
        %929 = vmatprep.subr.mxu0 0.0
        %930 = vmatpush1.msra.mxu0 0.0
        %931 = vmatprep.subr.mxu0 0.0
        %932 = vmatpush1.msra.mxu0 0.0
        %933 = vmatprep.subr.mxu0 0.0
        %934 = vmatpush1.msra.mxu0 0.0
        %935 = vmatprep.subr.mxu0 0.0
        %936 = vmatpush1.msra.mxu0 0.0
        %937 = vmatprep.subr.mxu0 0.0
        %938 = vmatpush1.msra.mxu0 0.0
        %939 = vmatprep.subr.mxu0 0.0
        %940 = vmatpush1.msra.mxu0 0.0
        %941 = vmatprep.subr.mxu0 0.0
        %942 = vmatpush1.msra.mxu0 0.0
        %943 = vmatprep.subr.mxu0 0.0
        %944 = vmatpush1.msra.mxu0 0.0
        %945 = vmatprep.subr.mxu0 0.0
        %946 = vmatpush1.msra.mxu0 0.0
        %947 = vmatprep.subr.mxu0 0.0
        %948 = vmatpush1.msra.mxu0 0.0
        %949 = vmatprep.subr.mxu0 0.0
        %950 = vmatpush1.msra.mxu0 0.0
        %951 = vmatprep.subr.mxu0 0.0
        %952 = vmatpush1.msra.mxu0 0.0
        %953 = vmatprep.subr.mxu0 0.0
        %954 = vmatpush1.msra.mxu0 0.0
        %955 = vmatprep.subr.mxu0 0.0
        %956 = vmatpush1.msra.mxu0 0.0
        %957 = vmatprep.subr.mxu0 0.0
        %958 = vmatpush1.msra.mxu0 0.0
        %959 = vmatprep.subr.mxu0 0.0
        %960 = vmatpush1.msra.mxu0 0.0
        %961 = vmatprep.subr.mxu0 0.0
        %962 = vmatpush1.msra.mxu0 0.0
        %963 = vmatprep.subr.mxu0 0.0
        %964 = vmatpush1.msra.mxu0 0.0
        %965 = vmatprep.subr.mxu0 0.0
        %966 = vmatpush1.msra.mxu0 0.0
        %967 = vmatprep.subr.mxu0 0.0
        %968 = vmatpush1.msra.mxu0 0.0
        %969 = vmatprep.subr.mxu0 0.0
        %970 = vmatpush1.msra.mxu0 0.0
        %971 = vmatprep.subr.mxu0 0.0
        %972 = vmatpush1.msra.mxu0 0.0
        %973 = vmatprep.subr.mxu0 0.0
        %974 = vmatpush1.msra.mxu0 0.0
        %975 = vmatprep.subr.mxu0 0.0
        %976 = vmatpush1.msra.mxu0 0.0
        %977 = vmatprep.subr.mxu0 0.0
        %978 = vmatpush1.msra.mxu0 0.0
        %979 = vmatprep.subr.mxu0 0.0
        %980 = vmatpush1.msra.mxu0 0.0
        %981 = vmatprep.subr.mxu0 0.0
        %982 = vmatpush1.msra.mxu0 0.0
        %983 = vmatprep.subr.mxu0 0.0
        %984 = vmatpush1.msra.mxu0 0.0
        %985 = vmatprep.mubr.f32.mxu0 0.0
        %986 = vmatmul.mubr.f32.gmra.mrb[0].mxu0 %v821
        %v987 = vpop.f32.mrb[0].mxu0
        %v988 = vadd.f32 %v802, %v987
        %v989 = vpop.f32.mrb[0].mxu0
        %v990 = vadd.f32 %v802, %v989
        %991 = vmatprep.mubr.f32.mxu0 0.0
        %992 = vmatmul.mubr.f32.gmra.mrb[0].mxu0 %v824
        %v993 = vpop.f32.mrb[0].mxu0
        %v994 = vadd.f32 %v807, %v993
        %v995 = vpop.f32.mrb[0].mxu0
        %v996 = vadd.f32 %v807, %v995
        %997 = vmatprep.mubr.f32.mxu0 0.0
        %998 = vmatmul.mubr.f32.gmra.mrb[0].mxu0 %v827
        %v999 = vpop.f32.mrb[0].mxu0
        %v1000 = vadd.f32 %v812, %v999
        %v1001 = vpop.f32.mrb[0].mxu0
        %v1002 = vadd.f32 %v812, %v1001
        %1003 = vmatprep.mubr.f32.mxu0 0.0
        %1004 = vmatmul.mubr.f32.gmra.mrb[0].mxu0 %v830
        %v1005 = vpop.f32.mrb[0].mxu0
        %v1006 = vadd.f32 %v817, %v1005
        %v1007 = vpop.f32.mrb[0].mxu0
        %v1008 = vadd.f32 %v817, %v1007
        %1009 = vdwg.mxu0
        %v1010 = vmax.f32 %v899, 0.0
        %v1011 = vmax.f32 %v901, 0.0
        %v1012 = vmax.f32 %v988, 0.0
        %v1013 = vmax.f32 %v990, 0.0
        %v1014 = vmax.f32 %v905, 0.0
        %v1015 = vmax.f32 %v907, 0.0
        %v1016 = vmax.f32 %v994, 0.0
        %v1017 = vmax.f32 %v996, 0.0
        %v1018 = vmax.f32 %v911, 0.0
        %v1019 = vmax.f32 %v913, 0.0
        %v1020 = vmax.f32 %v1000, 0.0
        %v1021 = vmax.f32 %v1002, 0.0
        %v1022 = vmax.f32 %v917, 0.0
        %v1023 = vmax.f32 %v919, 0.0
        %v1024 = vmax.f32 %v1006, 0.0
        %v1025 = vmax.f32 %v1008, 0.0
        %v1026 = vld [vmem:[%s5] sm:$0xff]
        %v1027 = vld [vmem:[%s6] sm:$0x1]
        %v1029 = vlaneseq
        %v1030 = vshrl.u32 %v1029, 7
        %v1031 = vsub.s32 0, %v1030
        %v1032 = vrot.slane %v1027, %v1031
        %1034 = vxpose.xlu0.b32.start [1/16] %v1010, 128
        %1035 = vxpose.xlu0.b32.cont [2/16] %v1014, 128
        %1036 = vxpose.xlu0.b32.cont [3/16] %v1018, 128
        %1037 = vxpose.xlu0.b32.cont [4/16] %v1022, 128
        %1038 = vxpose.xlu0.b32.cont [5/16] 0.0, 128
        %1039 = vxpose.xlu0.b32.cont [6/16] 0.0, 128
        %1040 = vxpose.xlu0.b32.cont [7/16] 0.0, 128
        %1041 = vxpose.xlu0.b32.cont [8/16] 0.0, 128
        %1042 = vxpose.xlu0.b32.cont [9/16] 0.0, 128
        %1043 = vxpose.xlu0.b32.cont [10/16] 0.0, 128
        %1044 = vxpose.xlu0.b32.cont [11/16] 0.0, 128
        %1045 = vxpose.xlu0.b32.cont [12/16] 0.0, 128
        %1046 = vxpose.xlu0.b32.cont [13/16] 0.0, 128
        %1047 = vxpose.xlu0.b32.cont [14/16] 0.0, 128
        %1048 = vxpose.xlu0.b32.cont [15/16] 0.0, 128
        %1049 = vxpose.xlu0.b32.end [16/16] 0.0, 128
        %v1050 = vpop.trf.xlu0
        %v1051 = vpop.trf.xlu0
        %v1052 = vpop.trf.xlu0
        %v1053 = vpop.trf.xlu0
        %v1054 = vpop.trf.xlu0
        %v1055 = vpop.trf.xlu0
        %v1056 = vpop.trf.xlu0
        %v1057 = vpop.trf.xlu0
        %v1058 = vpop.trf.xlu0
        %v1059 = vpop.trf.xlu0
        %v1060 = vpop.trf.xlu0
        %v1061 = vpop.trf.xlu0
        %v1062 = vpop.trf.xlu0
        %v1063 = vpop.trf.xlu0
        %v1064 = vpop.trf.xlu0
        %v1065 = vpop.trf.xlu0
        %1066 = vxpose.xlu0.b32.start [1/16] %v1011, 128
        %1067 = vxpose.xlu0.b32.cont [2/16] %v1015, 128
        %1068 = vxpose.xlu0.b32.cont [3/16] %v1019, 128
        %1069 = vxpose.xlu0.b32.cont [4/16] %v1023, 128
        %1070 = vxpose.xlu0.b32.cont [5/16] 0.0, 128
        %1071 = vxpose.xlu0.b32.cont [6/16] 0.0, 128
        %1072 = vxpose.xlu0.b32.cont [7/16] 0.0, 128
        %1073 = vxpose.xlu0.b32.cont [8/16] 0.0, 128
        %1074 = vxpose.xlu0.b32.cont [9/16] 0.0, 128
        %1075 = vxpose.xlu0.b32.cont [10/16] 0.0, 128
        %1076 = vxpose.xlu0.b32.cont [11/16] 0.0, 128
        %1077 = vxpose.xlu0.b32.cont [12/16] 0.0, 128
        %1078 = vxpose.xlu0.b32.cont [13/16] 0.0, 128
        %1079 = vxpose.xlu0.b32.cont [14/16] 0.0, 128
        %1080 = vxpose.xlu0.b32.cont [15/16] 0.0, 128
        %1081 = vxpose.xlu0.b32.end [16/16] 0.0, 128
        %v1082 = vpop.trf.xlu0
        %v1083 = vpop.trf.xlu0
        %v1084 = vpop.trf.xlu0
        %v1085 = vpop.trf.xlu0
        %v1086 = vpop.trf.xlu0
        %v1087 = vpop.trf.xlu0
        %v1088 = vpop.trf.xlu0
        %v1089 = vpop.trf.xlu0
        %v1090 = vpop.trf.xlu0
        %v1091 = vpop.trf.xlu0
        %v1092 = vpop.trf.xlu0
        %v1093 = vpop.trf.xlu0
        %v1094 = vpop.trf.xlu0
        %v1095 = vpop.trf.xlu0
        %v1096 = vpop.trf.xlu0
        %v1097 = vpop.trf.xlu0
        %1098 = vxpose.xlu0.b32.start [1/16] %v1012, 128
        %1099 = vxpose.xlu0.b32.cont [2/16] %v1016, 128
        %1100 = vxpose.xlu0.b32.cont [3/16] %v1020, 128
        %1101 = vxpose.xlu0.b32.cont [4/16] %v1024, 128
        %1102 = vxpose.xlu0.b32.cont [5/16] 0.0, 128
        %1103 = vxpose.xlu0.b32.cont [6/16] 0.0, 128
        %1104 = vxpose.xlu0.b32.cont [7/16] 0.0, 128
        %1105 = vxpose.xlu0.b32.cont [8/16] 0.0, 128
        %1106 = vxpose.xlu0.b32.cont [9/16] 0.0, 128
        %1107 = vxpose.xlu0.b32.cont [10/16] 0.0, 128
        %1108 = vxpose.xlu0.b32.cont [11/16] 0.0, 128
        %1109 = vxpose.xlu0.b32.cont [12/16] 0.0, 128
        %1110 = vxpose.xlu0.b32.cont [13/16] 0.0, 128
        %1111 = vxpose.xlu0.b32.cont [14/16] 0.0, 128
        %1112 = vxpose.xlu0.b32.cont [15/16] 0.0, 128
        %1113 = vxpose.xlu0.b32.end [16/16] 0.0, 128
        %v1114 = vpop.trf.xlu0
        %v1115 = vpop.trf.xlu0
        %v1116 = vpop.trf.xlu0
        %v1117 = vpop.trf.xlu0
        %v1118 = vpop.trf.xlu0
        %v1119 = vpop.trf.xlu0
        %v1120 = vpop.trf.xlu0
        %v1121 = vpop.trf.xlu0
        %v1122 = vpop.trf.xlu0
        %v1123 = vpop.trf.xlu0
        %v1124 = vpop.trf.xlu0
        %v1125 = vpop.trf.xlu0
        %v1126 = vpop.trf.xlu0
        %v1127 = vpop.trf.xlu0
        %v1128 = vpop.trf.xlu0
        %v1129 = vpop.trf.xlu0
        %1130 = vxpose.xlu0.b32.start [1/16] %v1013, 128
        %1131 = vxpose.xlu0.b32.cont [2/16] %v1017, 128
        %1132 = vxpose.xlu0.b32.cont [3/16] %v1021, 128
        %1133 = vxpose.xlu0.b32.cont [4/16] %v1025, 128
        %1134 = vxpose.xlu0.b32.cont [5/16] 0.0, 128
        %1135 = vxpose.xlu0.b32.cont [6/16] 0.0, 128
        %1136 = vxpose.xlu0.b32.cont [7/16] 0.0, 128
        %1137 = vxpose.xlu0.b32.cont [8/16] 0.0, 128
        %1138 = vxpose.xlu0.b32.cont [9/16] 0.0, 128
        %1139 = vxpose.xlu0.b32.cont [10/16] 0.0, 128
        %1140 = vxpose.xlu0.b32.cont [11/16] 0.0, 128
        %1141 = vxpose.xlu0.b32.cont [12/16] 0.0, 128
        %1142 = vxpose.xlu0.b32.cont [13/16] 0.0, 128
        %1143 = vxpose.xlu0.b32.cont [14/16] 0.0, 128
        %1144 = vxpose.xlu0.b32.cont [15/16] 0.0, 128
        %1145 = vxpose.xlu0.b32.end [16/16] 0.0, 128
        %v1146 = vpop.trf.xlu0
        %v1147 = vpop.trf.xlu0
        %v1148 = vpop.trf.xlu0
        %v1149 = vpop.trf.xlu0
        %v1150 = vpop.trf.xlu0
        %v1151 = vpop.trf.xlu0
        %v1152 = vpop.trf.xlu0
        %v1153 = vpop.trf.xlu0
        %v1154 = vpop.trf.xlu0
        %v1155 = vpop.trf.xlu0
        %v1156 = vpop.trf.xlu0
        %v1157 = vpop.trf.xlu0
        %v1158 = vpop.trf.xlu0
        %v1159 = vpop.trf.xlu0
        %v1160 = vpop.trf.xlu0
        %v1161 = vpop.trf.xlu0
        %v1163 = vsel %vm819, %v1050, 0
        %v1166 = vsel %vm819, %v1051, 0
        %v1169 = vsel %vm819, %v1052, 0
        %v1172 = vsel %vm819, %v1053, 0
        %v1175 = vsel %vm819, %v1054, 0
        %v1178 = vsel %vm819, %v1055, 0
        %v1181 = vsel %vm819, %v1056, 0
        %v1184 = vsel %vm819, %v1057, 0
        %v1187 = vsel %vm819, %v1058, 0
        %v1190 = vsel %vm819, %v1059, 0
        %v1193 = vsel %vm819, %v1060, 0
        %v1196 = vsel %vm819, %v1061, 0
        %v1199 = vsel %vm819, %v1062, 0
        %v1202 = vsel %vm819, %v1063, 0
        %v1205 = vsel %vm819, %v1064, 0
        %v1208 = vsel %vm819, %v1065, 0
        %v1211 = vsel %vm819, %v1082, 0
        %v1214 = vsel %vm819, %v1083, 0
        %v1217 = vsel %vm819, %v1084, 0
        %v1220 = vsel %vm819, %v1085, 0
        %v1223 = vsel %vm819, %v1086, 0
        %v1226 = vsel %vm819, %v1087, 0
        %v1229 = vsel %vm819, %v1088, 0
        %v1232 = vsel %vm819, %v1089, 0
        %v1235 = vsel %vm819, %v1090, 0
        %v1238 = vsel %vm819, %v1091, 0
        %v1241 = vsel %vm819, %v1092, 0
        %v1244 = vsel %vm819, %v1093, 0
        %v1247 = vsel %vm819, %v1094, 0
        %v1250 = vsel %vm819, %v1095, 0
        %v1253 = vsel %vm819, %v1096, 0
        %v1256 = vsel %vm819, %v1097, 0
        %v1259 = vsel %vm819, %v1114, 0
        %v1262 = vsel %vm819, %v1115, 0
        %v1265 = vsel %vm819, %v1116, 0
        %v1268 = vsel %vm819, %v1117, 0
        %v1271 = vsel %vm819, %v1118, 0
        %v1274 = vsel %vm819, %v1119, 0
        %v1277 = vsel %vm819, %v1120, 0
        %v1280 = vsel %vm819, %v1121, 0
        %v1283 = vsel %vm819, %v1122, 0
        %v1286 = vsel %vm819, %v1123, 0
        %v1289 = vsel %vm819, %v1124, 0
        %v1292 = vsel %vm819, %v1125, 0
        %v1295 = vsel %vm819, %v1126, 0
        %v1298 = vsel %vm819, %v1127, 0
        %v1301 = vsel %vm819, %v1128, 0
        %v1304 = vsel %vm819, %v1129, 0
        %v1307 = vsel %vm819, %v1146, 0
        %v1310 = vsel %vm819, %v1147, 0
        %v1313 = vsel %vm819, %v1148, 0
        %v1316 = vsel %vm819, %v1149, 0
        %v1319 = vsel %vm819, %v1150, 0
        %v1322 = vsel %vm819, %v1151, 0
        %v1325 = vsel %vm819, %v1152, 0
        %v1328 = vsel %vm819, %v1153, 0
        %v1331 = vsel %vm819, %v1154, 0
        %v1334 = vsel %vm819, %v1155, 0
        %v1337 = vsel %vm819, %v1156, 0
        %v1340 = vsel %vm819, %v1157, 0
        %v1343 = vsel %vm819, %v1158, 0
        %v1346 = vsel %vm819, %v1159, 0
        %v1349 = vsel %vm819, %v1160, 0
        %v1352 = vsel %vm819, %v1161, 0
        %v1355 = vsel %vm819, %v1026, 0
        %1357 = vmatprep.subr.mxu0 0.0
        %1358 = vmatpush1.xpose.msra.mxu0 %v1355
        %1359 = vmatprep.subr.mxu0 0.0
        %1360 = vmatpush1.xpose.msra.mxu0 0.0
        %1361 = vmatprep.subr.mxu0 0.0
        %1362 = vmatpush1.xpose.msra.mxu0 0.0
        %1363 = vmatprep.subr.mxu0 0.0
        %1364 = vmatpush1.xpose.msra.mxu0 0.0
        %1365 = vmatprep.subr.mxu0 0.0
        %1366 = vmatpush1.xpose.msra.mxu0 0.0
        %1367 = vmatprep.subr.mxu0 0.0
        %1368 = vmatpush1.xpose.msra.mxu0 0.0
        %1369 = vmatprep.subr.mxu0 0.0
        %1370 = vmatpush1.xpose.msra.mxu0 0.0
        %1371 = vmatprep.subr.mxu0 0.0
        %1372 = vmatpush1.xpose.msra.mxu0 0.0
        %1373 = vmatprep.subr.mxu0 0.0
        %1374 = vmatpush1.xpose.msra.mxu0 0.0
        %1375 = vmatprep.subr.mxu0 0.0
        %1376 = vmatpush1.xpose.msra.mxu0 0.0
        %1377 = vmatprep.subr.mxu0 0.0
        %1378 = vmatpush1.xpose.msra.mxu0 0.0
        %1379 = vmatprep.subr.mxu0 0.0
        %1380 = vmatpush1.xpose.msra.mxu0 0.0
        %1381 = vmatprep.subr.mxu0 0.0
        %1382 = vmatpush1.xpose.msra.mxu0 0.0
        %1383 = vmatprep.subr.mxu0 0.0
        %1384 = vmatpush1.xpose.msra.mxu0 0.0
        %1385 = vmatprep.subr.mxu0 0.0
        %1386 = vmatpush1.xpose.msra.mxu0 0.0
        %1387 = vmatprep.subr.mxu0 0.0
        %1388 = vmatpush1.xpose.msra.mxu0 0.0
        %1389 = vmatprep.subr.mxu0 0.0
        %1390 = vmatpush1.xpose.msra.mxu0 0.0
        %1391 = vmatprep.subr.mxu0 0.0
        %1392 = vmatpush1.xpose.msra.mxu0 0.0
        %1393 = vmatprep.subr.mxu0 0.0
        %1394 = vmatpush1.xpose.msra.mxu0 0.0
        %1395 = vmatprep.subr.mxu0 0.0
        %1396 = vmatpush1.xpose.msra.mxu0 0.0
        %1397 = vmatprep.subr.mxu0 0.0
        %1398 = vmatpush1.xpose.msra.mxu0 0.0
        %1399 = vmatprep.subr.mxu0 0.0
        %1400 = vmatpush1.xpose.msra.mxu0 0.0
        %1401 = vmatprep.subr.mxu0 0.0
        %1402 = vmatpush1.xpose.msra.mxu0 0.0
        %1403 = vmatprep.subr.mxu0 0.0
        %1404 = vmatpush1.xpose.msra.mxu0 0.0
        %1405 = vmatprep.subr.mxu0 0.0
        %1406 = vmatpush1.xpose.msra.mxu0 0.0
        %1407 = vmatprep.subr.mxu0 0.0
        %1408 = vmatpush1.xpose.msra.mxu0 0.0
        %1409 = vmatprep.subr.mxu0 0.0
        %1410 = vmatpush1.xpose.msra.mxu0 0.0
        %1411 = vmatprep.subr.mxu0 0.0
        %1412 = vmatpush1.xpose.msra.mxu0 0.0
        %1413 = vmatprep.subr.mxu0 0.0
        %1414 = vmatpush1.xpose.msra.mxu0 0.0
        %1415 = vmatprep.subr.mxu0 0.0
        %1416 = vmatpush1.xpose.msra.mxu0 0.0
        %1417 = vmatprep.subr.mxu0 0.0
        %1418 = vmatpush1.xpose.msra.mxu0 0.0
        %1419 = vmatprep.subr.mxu0 0.0
        %1420 = vmatpush1.xpose.msra.mxu0 0.0
        %1421 = vmatprep.mubr.f32.mxu0 0.0
        %1422 = vmatmul.mubr.f32.gmra.mrb[0].mxu0 %v1163
        %v1423 = vpop.f32.mrb[0].mxu0
        %v1424 = vadd.f32 %v1032, %v1423
        %v1425 = vpop.f32.mrb[0].mxu0
        %1426 = vmatprep.mubr.f32.mxu0 0.0
        %1427 = vmatmul.mubr.f32.gmra.mrb[0].mxu0 %v1166
        %v1428 = vpop.f32.mrb[0].mxu0
        %v1429 = vadd.f32 %v1032, %v1428
        %v1430 = vpop.f32.mrb[0].mxu0
        %1431 = vmatprep.mubr.f32.mxu0 0.0
        %1432 = vmatmul.mubr.f32.gmra.mrb[0].mxu0 %v1169
        %v1433 = vpop.f32.mrb[0].mxu0
        %v1434 = vadd.f32 %v1032, %v1433
        %v1435 = vpop.f32.mrb[0].mxu0
        %1436 = vmatprep.mubr.f32.mxu0 0.0
        %1437 = vmatmul.mubr.f32.gmra.mrb[0].mxu0 %v1172
        %v1438 = vpop.f32.mrb[0].mxu0
        %v1439 = vadd.f32 %v1032, %v1438
        %v1440 = vpop.f32.mrb[0].mxu0
        %1441 = vmatprep.mubr.f32.mxu0 0.0
        %1442 = vmatmul.mubr.f32.gmra.mrb[0].mxu0 %v1175
        %v1443 = vpop.f32.mrb[0].mxu0
        %v1444 = vadd.f32 %v1032, %v1443
        %v1445 = vpop.f32.mrb[0].mxu0
        %1446 = vmatprep.mubr.f32.mxu0 0.0
        %1447 = vmatmul.mubr.f32.gmra.mrb[0].mxu0 %v1178
        %v1448 = vpop.f32.mrb[0].mxu0
        %v1449 = vadd.f32 %v1032, %v1448
        %v1450 = vpop.f32.mrb[0].mxu0
        %1451 = vmatprep.mubr.f32.mxu0 0.0
        %1452 = vmatmul.mubr.f32.gmra.mrb[0].mxu0 %v1181
        %v1453 = vpop.f32.mrb[0].mxu0
        %v1454 = vadd.f32 %v1032, %v1453
        %v1455 = vpop.f32.mrb[0].mxu0
        %1456 = vmatprep.mubr.f32.mxu0 0.0
        %1457 = vmatmul.mubr.f32.gmra.mrb[0].mxu0 %v1184
        %v1458 = vpop.f32.mrb[0].mxu0
        %v1459 = vadd.f32 %v1032, %v1458
        %v1460 = vpop.f32.mrb[0].mxu0
        %1461 = vmatprep.mubr.f32.mxu0 0.0
        %1462 = vmatmul.mubr.f32.gmra.mrb[0].mxu0 %v1187
        %v1463 = vpop.f32.mrb[0].mxu0
        %v1464 = vadd.f32 %v1032, %v1463
        %v1465 = vpop.f32.mrb[0].mxu0
        %1466 = vmatprep.mubr.f32.mxu0 0.0
        %1467 = vmatmul.mubr.f32.gmra.mrb[0].mxu0 %v1190
        %v1468 = vpop.f32.mrb[0].mxu0
        %v1469 = vadd.f32 %v1032, %v1468
        %v1470 = vpop.f32.mrb[0].mxu0
        %1471 = vmatprep.mubr.f32.mxu0 0.0
        %1472 = vmatmul.mubr.f32.gmra.mrb[0].mxu0 %v1193
        %v1473 = vpop.f32.mrb[0].mxu0
        %v1474 = vadd.f32 %v1032, %v1473
        %v1475 = vpop.f32.mrb[0].mxu0
        %1476 = vmatprep.mubr.f32.mxu0 0.0
        %1477 = vmatmul.mubr.f32.gmra.mrb[0].mxu0 %v1196
        %v1478 = vpop.f32.mrb[0].mxu0
        %v1479 = vadd.f32 %v1032, %v1478
        %v1480 = vpop.f32.mrb[0].mxu0
        %1481 = vmatprep.mubr.f32.mxu0 0.0
        %1482 = vmatmul.mubr.f32.gmra.mrb[0].mxu0 %v1199
        %v1483 = vpop.f32.mrb[0].mxu0
        %v1484 = vadd.f32 %v1032, %v1483
        %v1485 = vpop.f32.mrb[0].mxu0
        %1486 = vmatprep.mubr.f32.mxu0 0.0
        %1487 = vmatmul.mubr.f32.gmra.mrb[0].mxu0 %v1202
        %v1488 = vpop.f32.mrb[0].mxu0
        %v1489 = vadd.f32 %v1032, %v1488
        %v1490 = vpop.f32.mrb[0].mxu0
        %1491 = vmatprep.mubr.f32.mxu0 0.0
        %1492 = vmatmul.mubr.f32.gmra.mrb[0].mxu0 %v1205
        %v1493 = vpop.f32.mrb[0].mxu0
        %v1494 = vadd.f32 %v1032, %v1493
        %v1495 = vpop.f32.mrb[0].mxu0
        %1496 = vmatprep.mubr.f32.mxu0 0.0
        %1497 = vmatmul.mubr.f32.gmra.mrb[0].mxu0 %v1208
        %v1498 = vpop.f32.mrb[0].mxu0
        %v1499 = vadd.f32 %v1032, %v1498
        %v1500 = vpop.f32.mrb[0].mxu0
        %1501 = vmatprep.mubr.f32.mxu0 0.0
        %1502 = vmatmul.mubr.f32.gmra.mrb[0].mxu0 %v1211
        %v1503 = vpop.f32.mrb[0].mxu0
        %v1504 = vadd.f32 %v1032, %v1503
        %v1505 = vpop.f32.mrb[0].mxu0
        %1506 = vmatprep.mubr.f32.mxu0 0.0
        %1507 = vmatmul.mubr.f32.gmra.mrb[0].mxu0 %v1214
        %v1508 = vpop.f32.mrb[0].mxu0
        %v1509 = vadd.f32 %v1032, %v1508
        %v1510 = vpop.f32.mrb[0].mxu0
        %1511 = vmatprep.mubr.f32.mxu0 0.0
        %1512 = vmatmul.mubr.f32.gmra.mrb[0].mxu0 %v1217
        %v1513 = vpop.f32.mrb[0].mxu0
        %v1514 = vadd.f32 %v1032, %v1513
        %v1515 = vpop.f32.mrb[0].mxu0
        %1516 = vmatprep.mubr.f32.mxu0 0.0
        %1517 = vmatmul.mubr.f32.gmra.mrb[0].mxu0 %v1220
        %v1518 = vpop.f32.mrb[0].mxu0
        %v1519 = vadd.f32 %v1032, %v1518
        %v1520 = vpop.f32.mrb[0].mxu0
        %1521 = vmatprep.mubr.f32.mxu0 0.0
        %1522 = vmatmul.mubr.f32.gmra.mrb[0].mxu0 %v1223
        %v1523 = vpop.f32.mrb[0].mxu0
        %v1524 = vadd.f32 %v1032, %v1523
        %v1525 = vpop.f32.mrb[0].mxu0
        %1526 = vmatprep.mubr.f32.mxu0 0.0
        %1527 = vmatmul.mubr.f32.gmra.mrb[0].mxu0 %v1226
        %v1528 = vpop.f32.mrb[0].mxu0
        %v1529 = vadd.f32 %v1032, %v1528
        %v1530 = vpop.f32.mrb[0].mxu0
        %1531 = vmatprep.mubr.f32.mxu0 0.0
        %1532 = vmatmul.mubr.f32.gmra.mrb[0].mxu0 %v1229
        %v1533 = vpop.f32.mrb[0].mxu0
        %v1534 = vadd.f32 %v1032, %v1533
        %v1535 = vpop.f32.mrb[0].mxu0
        %1536 = vmatprep.mubr.f32.mxu0 0.0
        %1537 = vmatmul.mubr.f32.gmra.mrb[0].mxu0 %v1232
        %v1538 = vpop.f32.mrb[0].mxu0
        %v1539 = vadd.f32 %v1032, %v1538
        %v1540 = vpop.f32.mrb[0].mxu0
        %1541 = vmatprep.mubr.f32.mxu0 0.0
        %1542 = vmatmul.mubr.f32.gmra.mrb[0].mxu0 %v1235
        %v1543 = vpop.f32.mrb[0].mxu0
        %v1544 = vadd.f32 %v1032, %v1543
        %v1545 = vpop.f32.mrb[0].mxu0
        %1546 = vmatprep.mubr.f32.mxu0 0.0
        %1547 = vmatmul.mubr.f32.gmra.mrb[0].mxu0 %v1238
        %v1548 = vpop.f32.mrb[0].mxu0
        %v1549 = vadd.f32 %v1032, %v1548
        %v1550 = vpop.f32.mrb[0].mxu0
        %1551 = vmatprep.mubr.f32.mxu0 0.0
        %1552 = vmatmul.mubr.f32.gmra.mrb[0].mxu0 %v1241
        %v1553 = vpop.f32.mrb[0].mxu0
        %v1554 = vadd.f32 %v1032, %v1553
        %v1555 = vpop.f32.mrb[0].mxu0
        %1556 = vmatprep.mubr.f32.mxu0 0.0
        %1557 = vmatmul.mubr.f32.gmra.mrb[0].mxu0 %v1244
        %v1558 = vpop.f32.mrb[0].mxu0
        %v1559 = vadd.f32 %v1032, %v1558
        %v1560 = vpop.f32.mrb[0].mxu0
        %1561 = vmatprep.mubr.f32.mxu0 0.0
        %1562 = vmatmul.mubr.f32.gmra.mrb[0].mxu0 %v1247
        %v1563 = vpop.f32.mrb[0].mxu0
        %v1564 = vadd.f32 %v1032, %v1563
        %v1565 = vpop.f32.mrb[0].mxu0
        %1566 = vmatprep.mubr.f32.mxu0 0.0
        %1567 = vmatmul.mubr.f32.gmra.mrb[0].mxu0 %v1250
        %v1568 = vpop.f32.mrb[0].mxu0
        %v1569 = vadd.f32 %v1032, %v1568
        %v1570 = vpop.f32.mrb[0].mxu0
        %1571 = vmatprep.mubr.f32.mxu0 0.0
        %1572 = vmatmul.mubr.f32.gmra.mrb[0].mxu0 %v1253
        %v1573 = vpop.f32.mrb[0].mxu0
        %v1574 = vadd.f32 %v1032, %v1573
        %v1575 = vpop.f32.mrb[0].mxu0
        %1576 = vmatprep.mubr.f32.mxu0 0.0
        %1577 = vmatmul.mubr.f32.gmra.mrb[0].mxu0 %v1256
        %v1578 = vpop.f32.mrb[0].mxu0
        %v1579 = vadd.f32 %v1032, %v1578
        %v1580 = vpop.f32.mrb[0].mxu0
        %1581 = vmatprep.mubr.f32.mxu0 0.0
        %1582 = vmatmul.mubr.f32.gmra.mrb[0].mxu0 %v1259
        %v1583 = vpop.f32.mrb[0].mxu0
        %v1584 = vadd.f32 %v1032, %v1583
        %v1585 = vpop.f32.mrb[0].mxu0
        %1586 = vmatprep.mubr.f32.mxu0 0.0
        %1587 = vmatmul.mubr.f32.gmra.mrb[0].mxu0 %v1262
        %v1588 = vpop.f32.mrb[0].mxu0
        %v1589 = vadd.f32 %v1032, %v1588
        %v1590 = vpop.f32.mrb[0].mxu0
        %1591 = vmatprep.mubr.f32.mxu0 0.0
        %1592 = vmatmul.mubr.f32.gmra.mrb[0].mxu0 %v1265
        %v1593 = vpop.f32.mrb[0].mxu0
        %v1594 = vadd.f32 %v1032, %v1593
        %v1595 = vpop.f32.mrb[0].mxu0
        %1596 = vmatprep.mubr.f32.mxu0 0.0
        %1597 = vmatmul.mubr.f32.gmra.mrb[0].mxu0 %v1268
        %v1598 = vpop.f32.mrb[0].mxu0
        %v1599 = vadd.f32 %v1032, %v1598
        %v1600 = vpop.f32.mrb[0].mxu0
        %1601 = vmatprep.mubr.f32.mxu0 0.0
        %1602 = vmatmul.mubr.f32.gmra.mrb[0].mxu0 %v1271
        %v1603 = vpop.f32.mrb[0].mxu0
        %v1604 = vadd.f32 %v1032, %v1603
        %v1605 = vpop.f32.mrb[0].mxu0
        %1606 = vmatprep.mubr.f32.mxu0 0.0
        %1607 = vmatmul.mubr.f32.gmra.mrb[0].mxu0 %v1274
        %v1608 = vpop.f32.mrb[0].mxu0
        %v1609 = vadd.f32 %v1032, %v1608
        %v1610 = vpop.f32.mrb[0].mxu0
        %1611 = vmatprep.mubr.f32.mxu0 0.0
        %1612 = vmatmul.mubr.f32.gmra.mrb[0].mxu0 %v1277
        %v1613 = vpop.f32.mrb[0].mxu0
        %v1614 = vadd.f32 %v1032, %v1613
        %v1615 = vpop.f32.mrb[0].mxu0
        %1616 = vmatprep.mubr.f32.mxu0 0.0
        %1617 = vmatmul.mubr.f32.gmra.mrb[0].mxu0 %v1280
        %v1618 = vpop.f32.mrb[0].mxu0
        %v1619 = vadd.f32 %v1032, %v1618
        %v1620 = vpop.f32.mrb[0].mxu0
        %1621 = vmatprep.mubr.f32.mxu0 0.0
        %1622 = vmatmul.mubr.f32.gmra.mrb[0].mxu0 %v1283
        %v1623 = vpop.f32.mrb[0].mxu0
        %v1624 = vadd.f32 %v1032, %v1623
        %v1625 = vpop.f32.mrb[0].mxu0
        %1626 = vmatprep.mubr.f32.mxu0 0.0
        %1627 = vmatmul.mubr.f32.gmra.mrb[0].mxu0 %v1286
        %v1628 = vpop.f32.mrb[0].mxu0
        %v1629 = vadd.f32 %v1032, %v1628
        %v1630 = vpop.f32.mrb[0].mxu0
        %1631 = vmatprep.mubr.f32.mxu0 0.0
        %1632 = vmatmul.mubr.f32.gmra.mrb[0].mxu0 %v1289
        %v1633 = vpop.f32.mrb[0].mxu0
        %v1634 = vadd.f32 %v1032, %v1633
        %v1635 = vpop.f32.mrb[0].mxu0
        %1636 = vmatprep.mubr.f32.mxu0 0.0
        %1637 = vmatmul.mubr.f32.gmra.mrb[0].mxu0 %v1292
        %v1638 = vpop.f32.mrb[0].mxu0
        %v1639 = vadd.f32 %v1032, %v1638
        %v1640 = vpop.f32.mrb[0].mxu0
        %1641 = vmatprep.mubr.f32.mxu0 0.0
        %1642 = vmatmul.mubr.f32.gmra.mrb[0].mxu0 %v1295
        %v1643 = vpop.f32.mrb[0].mxu0
        %v1644 = vadd.f32 %v1032, %v1643
        %v1645 = vpop.f32.mrb[0].mxu0
        %1646 = vmatprep.mubr.f32.mxu0 0.0
        %1647 = vmatmul.mubr.f32.gmra.mrb[0].mxu0 %v1298
        %v1648 = vpop.f32.mrb[0].mxu0
        %v1649 = vadd.f32 %v1032, %v1648
        %v1650 = vpop.f32.mrb[0].mxu0
        %1651 = vmatprep.mubr.f32.mxu0 0.0
        %1652 = vmatmul.mubr.f32.gmra.mrb[0].mxu0 %v1301
        %v1653 = vpop.f32.mrb[0].mxu0
        %v1654 = vadd.f32 %v1032, %v1653
        %v1655 = vpop.f32.mrb[0].mxu0
        %1656 = vmatprep.mubr.f32.mxu0 0.0
        %1657 = vmatmul.mubr.f32.gmra.mrb[0].mxu0 %v1304
        %v1658 = vpop.f32.mrb[0].mxu0
        %v1659 = vadd.f32 %v1032, %v1658
        %v1660 = vpop.f32.mrb[0].mxu0
        %1661 = vmatprep.mubr.f32.mxu0 0.0
        %1662 = vmatmul.mubr.f32.gmra.mrb[0].mxu0 %v1307
        %v1663 = vpop.f32.mrb[0].mxu0
        %v1664 = vadd.f32 %v1032, %v1663
        %v1665 = vpop.f32.mrb[0].mxu0
        %1666 = vmatprep.mubr.f32.mxu0 0.0
        %1667 = vmatmul.mubr.f32.gmra.mrb[0].mxu0 %v1310
        %v1668 = vpop.f32.mrb[0].mxu0
        %v1669 = vadd.f32 %v1032, %v1668
        %v1670 = vpop.f32.mrb[0].mxu0
        %1671 = vmatprep.mubr.f32.mxu0 0.0
        %1672 = vmatmul.mubr.f32.gmra.mrb[0].mxu0 %v1313
        %v1673 = vpop.f32.mrb[0].mxu0
        %v1674 = vadd.f32 %v1032, %v1673
        %v1675 = vpop.f32.mrb[0].mxu0
        %1676 = vmatprep.mubr.f32.mxu0 0.0
        %1677 = vmatmul.mubr.f32.gmra.mrb[0].mxu0 %v1316
        %v1678 = vpop.f32.mrb[0].mxu0
        %v1679 = vadd.f32 %v1032, %v1678
        %v1680 = vpop.f32.mrb[0].mxu0
        %1681 = vmatprep.mubr.f32.mxu0 0.0
        %1682 = vmatmul.mubr.f32.gmra.mrb[0].mxu0 %v1319
        %v1683 = vpop.f32.mrb[0].mxu0
        %v1684 = vadd.f32 %v1032, %v1683
        %v1685 = vpop.f32.mrb[0].mxu0
        %1686 = vmatprep.mubr.f32.mxu0 0.0
        %1687 = vmatmul.mubr.f32.gmra.mrb[0].mxu0 %v1322
        %v1688 = vpop.f32.mrb[0].mxu0
        %v1689 = vadd.f32 %v1032, %v1688
        %v1690 = vpop.f32.mrb[0].mxu0
        %1691 = vmatprep.mubr.f32.mxu0 0.0
        %1692 = vmatmul.mubr.f32.gmra.mrb[0].mxu0 %v1325
        %v1693 = vpop.f32.mrb[0].mxu0
        %v1694 = vadd.f32 %v1032, %v1693
        %v1695 = vpop.f32.mrb[0].mxu0
        %1696 = vmatprep.mubr.f32.mxu0 0.0
        %1697 = vmatmul.mubr.f32.gmra.mrb[0].mxu0 %v1328
        %v1698 = vpop.f32.mrb[0].mxu0
        %v1699 = vadd.f32 %v1032, %v1698
        %v1700 = vpop.f32.mrb[0].mxu0
        %1701 = vmatprep.mubr.f32.mxu0 0.0
        %1702 = vmatmul.mubr.f32.gmra.mrb[0].mxu0 %v1331
        %v1703 = vpop.f32.mrb[0].mxu0
        %v1704 = vadd.f32 %v1032, %v1703
        %v1705 = vpop.f32.mrb[0].mxu0
        %1706 = vmatprep.mubr.f32.mxu0 0.0
        %1707 = vmatmul.mubr.f32.gmra.mrb[0].mxu0 %v1334
        %v1708 = vpop.f32.mrb[0].mxu0
        %v1709 = vadd.f32 %v1032, %v1708
        %v1710 = vpop.f32.mrb[0].mxu0
        %1711 = vmatprep.mubr.f32.mxu0 0.0
        %1712 = vmatmul.mubr.f32.gmra.mrb[0].mxu0 %v1337
        %v1713 = vpop.f32.mrb[0].mxu0
        %v1714 = vadd.f32 %v1032, %v1713
        %v1715 = vpop.f32.mrb[0].mxu0
        %1716 = vmatprep.mubr.f32.mxu0 0.0
        %1717 = vmatmul.mubr.f32.gmra.mrb[0].mxu0 %v1340
        %v1718 = vpop.f32.mrb[0].mxu0
        %v1719 = vadd.f32 %v1032, %v1718
        %v1720 = vpop.f32.mrb[0].mxu0
        %1721 = vmatprep.mubr.f32.mxu0 0.0
        %1722 = vmatmul.mubr.f32.gmra.mrb[0].mxu0 %v1343
        %v1723 = vpop.f32.mrb[0].mxu0
        %v1724 = vadd.f32 %v1032, %v1723
        %v1725 = vpop.f32.mrb[0].mxu0
        %1726 = vmatprep.mubr.f32.mxu0 0.0
        %1727 = vmatmul.mubr.f32.gmra.mrb[0].mxu0 %v1346
        %v1728 = vpop.f32.mrb[0].mxu0
        %v1729 = vadd.f32 %v1032, %v1728
        %v1730 = vpop.f32.mrb[0].mxu0
        %1731 = vmatprep.mubr.f32.mxu0 0.0
        %1732 = vmatmul.mubr.f32.gmra.mrb[0].mxu0 %v1349
        %v1733 = vpop.f32.mrb[0].mxu0
        %v1734 = vadd.f32 %v1032, %v1733
        %v1735 = vpop.f32.mrb[0].mxu0
        %1736 = vmatprep.mubr.f32.mxu0 0.0
        %1737 = vmatmul.mubr.f32.gmra.mrb[0].mxu0 %v1352
        %v1738 = vpop.f32.mrb[0].mxu0
        %v1739 = vadd.f32 %v1032, %v1738
        %v1740 = vpop.f32.mrb[0].mxu0
        %1741 = vdwg.mxu0
        %vm1742 = vcmask 64512
        %1743 = vst.msk [vmem:[%s280] sm:$0xff] %vm1742, %v1424
        %1744 = vst.msk [vmem:[%s280 + $0x8] sm:$0xff] %vm1742, %v1429
        %1745 = vst.msk [vmem:[%s280 + $0x10] sm:$0xff] %vm1742, %v1434
        %1746 = vst.msk [vmem:[%s280 + $0x18] sm:$0xff] %vm1742, %v1439
        %1747 = vst.msk [vmem:[%s280 + $0x20] sm:$0xff] %vm1742, %v1444
        %1748 = vst.msk [vmem:[%s280 + $0x28] sm:$0xff] %vm1742, %v1449
        %1749 = vst.msk [vmem:[%s280 + $0x30] sm:$0xff] %vm1742, %v1454
        %1750 = vst.msk [vmem:[%s280 + $0x38] sm:$0xff] %vm1742, %v1459
        %1751 = vst.msk [vmem:[%s280 + $0x40] sm:$0xff] %vm1742, %v1464
        %1752 = vst.msk [vmem:[%s280 + $0x48] sm:$0xff] %vm1742, %v1469
        %1753 = vst.msk [vmem:[%s280 + $0x50] sm:$0xff] %vm1742, %v1474
        %1754 = vst.msk [vmem:[%s280 + $0x58] sm:$0xff] %vm1742, %v1479
        %1755 = vst.msk [vmem:[%s280 + $0x60] sm:$0xff] %vm1742, %v1484
        %1756 = vst.msk [vmem:[%s280 + $0x68] sm:$0xff] %vm1742, %v1489
        %1757 = vst.msk [vmem:[%s280 + $0x70] sm:$0xff] %vm1742, %v1494
        %1758 = vst.msk [vmem:[%s280 + $0x78] sm:$0xff] %vm1742, %v1499
        %1759 = vst.msk [vmem:[%s280 + $0x80] sm:$0xff] %vm1742, %v1504
        %1760 = vst.msk [vmem:[%s280 + $0x88] sm:$0xff] %vm1742, %v1509
        %1761 = vst.msk [vmem:[%s280 + $0x90] sm:$0xff] %vm1742, %v1514
        %1762 = vst.msk [vmem:[%s280 + $0x98] sm:$0xff] %vm1742, %v1519
        %1763 = vst.msk [vmem:[%s280 + $0xa0] sm:$0xff] %vm1742, %v1524
        %1764 = vst.msk [vmem:[%s280 + $0xa8] sm:$0xff] %vm1742, %v1529
        %1765 = vst.msk [vmem:[%s280 + $0xb0] sm:$0xff] %vm1742, %v1534
        %1766 = vst.msk [vmem:[%s280 + $0xb8] sm:$0xff] %vm1742, %v1539
        %1767 = vst.msk [vmem:[%s280 + $0xc0] sm:$0xff] %vm1742, %v1544
        %1768 = vst.msk [vmem:[%s280 + $0xc8] sm:$0xff] %vm1742, %v1549
        %1769 = vst.msk [vmem:[%s280 + $0xd0] sm:$0xff] %vm1742, %v1554
        %1770 = vst.msk [vmem:[%s280 + $0xd8] sm:$0xff] %vm1742, %v1559
        %1771 = vst.msk [vmem:[%s280 + $0xe0] sm:$0xff] %vm1742, %v1564
        %1772 = vst.msk [vmem:[%s280 + $0xe8] sm:$0xff] %vm1742, %v1569
        %1773 = vst.msk [vmem:[%s280 + $0xf0] sm:$0xff] %vm1742, %v1574
        %1774 = vst.msk [vmem:[%s280 + $0xf8] sm:$0xff] %vm1742, %v1579
        %1775 = vst.msk [vmem:[%s280 + $0x100] sm:$0xff] %vm1742, %v1584
        %1776 = vst.msk [vmem:[%s280 + $0x108] sm:$0xff] %vm1742, %v1589
        %1777 = vst.msk [vmem:[%s280 + $0x110] sm:$0xff] %vm1742, %v1594
        %1778 = vst.msk [vmem:[%s280 + $0x118] sm:$0xff] %vm1742, %v1599
        %1779 = vst.msk [vmem:[%s280 + $0x120] sm:$0xff] %vm1742, %v1604
        %1780 = vst.msk [vmem:[%s280 + $0x128] sm:$0xff] %vm1742, %v1609
        %1781 = vst.msk [vmem:[%s280 + $0x130] sm:$0xff] %vm1742, %v1614
        %1782 = vst.msk [vmem:[%s280 + $0x138] sm:$0xff] %vm1742, %v1619
        %1783 = vst.msk [vmem:[%s280 + $0x140] sm:$0xff] %vm1742, %v1624
        %1784 = vst.msk [vmem:[%s280 + $0x148] sm:$0xff] %vm1742, %v1629
        %1785 = vst.msk [vmem:[%s280 + $0x150] sm:$0xff] %vm1742, %v1634
        %1786 = vst.msk [vmem:[%s280 + $0x158] sm:$0xff] %vm1742, %v1639
        %1787 = vst.msk [vmem:[%s280 + $0x160] sm:$0xff] %vm1742, %v1644
        %1788 = vst.msk [vmem:[%s280 + $0x168] sm:$0xff] %vm1742, %v1649
        %1789 = vst.msk [vmem:[%s280 + $0x170] sm:$0xff] %vm1742, %v1654
        %1790 = vst.msk [vmem:[%s280 + $0x178] sm:$0xff] %vm1742, %v1659
        %1791 = vst.msk [vmem:[%s280 + $0x180] sm:$0xff] %vm1742, %v1664
        %1792 = vst.msk [vmem:[%s280 + $0x188] sm:$0xff] %vm1742, %v1669
        %1793 = vst.msk [vmem:[%s280 + $0x190] sm:$0xff] %vm1742, %v1674
        %1794 = vst.msk [vmem:[%s280 + $0x198] sm:$0xff] %vm1742, %v1679
        %1795 = vst.msk [vmem:[%s280 + $0x1a0] sm:$0xff] %vm1742, %v1684
        %1796 = vst.msk [vmem:[%s280 + $0x1a8] sm:$0xff] %vm1742, %v1689
        %1797 = vst.msk [vmem:[%s280 + $0x1b0] sm:$0xff] %vm1742, %v1694
        %1798 = vst.msk [vmem:[%s280 + $0x1b8] sm:$0xff] %vm1742, %v1699
        %1799 = vst.msk [vmem:[%s280 + $0x1c0] sm:$0xff] %vm1742, %v1704
        %1800 = vst.msk [vmem:[%s280 + $0x1c8] sm:$0xff] %vm1742, %v1709
        %1801 = vst.msk [vmem:[%s280 + $0x1d0] sm:$0xff] %vm1742, %v1714
        %1802 = vst.msk [vmem:[%s280 + $0x1d8] sm:$0xff] %vm1742, %v1719
        %1803 = vst.msk [vmem:[%s280 + $0x1e0] sm:$0xff] %vm1742, %v1724
        %1804 = vst.msk [vmem:[%s280 + $0x1e8] sm:$0xff] %vm1742, %v1729
        %1805 = vst.msk [vmem:[%s280 + $0x1f0] sm:$0xff] %vm1742, %v1734
        %1806 = vst.msk [vmem:[%s280 + $0x1f8] sm:$0xff] %vm1742, %v1739
        %s1807 = sand.u32 %s178, 1
        %s1808 = sand.u32 %s178, 1
        %s1809 = smul.addr %s1808, 512
        %s1810 = scalar_lea.vmem [#allocation2], %s1809
        // Predicated region
        $region49: #{tpu_custom_call.1} parent=47 // pred_check
          %p1811 = pneg %p188
        $region50: #{tpu_custom_call.1} parent=47 // pred_check_branch
          %1813 = sbr.rel (%p1811) target = $region52
        $region51: #{tpu_custom_call.1} parent=47 // pred_region
          %s1814 = smul.u32 64, %s18
          %s1815 = ssub.s32 125, %s1814
          %p1816 = scmp.lt.s32.totalorder %s1815, 64
          %s1817 = scalar_select %p1816, %s1815, 64
          %s1818 = smul.u32 128, %s1817
          %p1819 = scmp.ne.s32.totalorder 0, %s1818
          %s1820 = smul.addr %s1814, 8
          %s1821 = scalar_lea.vmem %s7, %s1820
          // Predicated region
          $region53: #{tpu_custom_call.1} parent=51 // pred_check
            %p1822 = pneg %p1819
          $region54: #{tpu_custom_call.1} parent=51 // pred_check_branch
            %1824 = sbr.rel (%p1822) target = $region56
          $region55: #{tpu_custom_call.1} parent=51 // pred_region
            // Predicated region
            $region57: #{tpu_custom_call.1} parent=55 // pred_check
              _
            $region58: #{tpu_custom_call.1} parent=55 // pred_check_branch
              %1826 = sbr.rel (0) target = $region60
            $region59: #{tpu_custom_call.1} parent=55 // pred_region
              // Predicated region
              $region79: #{tpu_custom_call.1} parent=59 // pred_check
                _
              $region80: #{tpu_custom_call.1} parent=59 // pred_check_branch
                %2001 = sbr.rel (0) target = $region82
              $region81: #{tpu_custom_call.1} parent=59 // pred_region
                %s2002 = sshrl.u32 %s1817, 6
                // While loop
                $region83: #{tpu_custom_call.1} parent=81 // loop_pre_header
                  _
                $region84: #{tpu_custom_call.1} parent=81 // loop_header
                  %s2004 = sphi 0, %s2006
                  %p2005 = scmp.ge.s32.totalorder %s2004, %s2002
                  %s2009 = sphi 0, %s2142
                  %s2010 = sphi %s1810, %s2145
                  %s2011 = sphi %s1821, %s2146
                $region85: #{tpu_custom_call.1} parent=81 // loop_header_branch
                  %2008 = sbr.rel (%p2005) target = $region89
                $region86: #{tpu_custom_call.1} parent=81 // loop_body
                  %v2012 = vld [vmem:[%s2010] sm:$0xff]
                  %2013 = vst [vmem:[%s2011] sm:$0xff] %v2012
                  %v2014 = vld [vmem:[%s2010 + $0x8] sm:$0xff]
                  %2015 = vst [vmem:[%s2011 + $0x8] sm:$0xff] %v2014
                  %v2016 = vld [vmem:[%s2010 + $0x10] sm:$0xff]
                  %2017 = vst [vmem:[%s2011 + $0x10] sm:$0xff] %v2016
                  %v2018 = vld [vmem:[%s2010 + $0x18] sm:$0xff]
                  %2019 = vst [vmem:[%s2011 + $0x18] sm:$0xff] %v2018
                  %v2020 = vld [vmem:[%s2010 + $0x20] sm:$0xff]
                  %2021 = vst [vmem:[%s2011 + $0x20] sm:$0xff] %v2020
                  %v2022 = vld [vmem:[%s2010 + $0x28] sm:$0xff]
                  %2023 = vst [vmem:[%s2011 + $0x28] sm:$0xff] %v2022
                  %v2024 = vld [vmem:[%s2010 + $0x30] sm:$0xff]
                  %2025 = vst [vmem:[%s2011 + $0x30] sm:$0xff] %v2024
                  %v2026 = vld [vmem:[%s2010 + $0x38] sm:$0xff]
                  %2027 = vst [vmem:[%s2011 + $0x38] sm:$0xff] %v2026
                  %v2028 = vld [vmem:[%s2010 + $0x40] sm:$0xff]
                  %2029 = vst [vmem:[%s2011 + $0x40] sm:$0xff] %v2028
                  %v2030 = vld [vmem:[%s2010 + $0x48] sm:$0xff]
                  %2031 = vst [vmem:[%s2011 + $0x48] sm:$0xff] %v2030
                  %v2032 = vld [vmem:[%s2010 + $0x50] sm:$0xff]
                  %2033 = vst [vmem:[%s2011 + $0x50] sm:$0xff] %v2032
                  %v2034 = vld [vmem:[%s2010 + $0x58] sm:$0xff]
                  %2035 = vst [vmem:[%s2011 + $0x58] sm:$0xff] %v2034
                  %v2036 = vld [vmem:[%s2010 + $0x60] sm:$0xff]
                  %2037 = vst [vmem:[%s2011 + $0x60] sm:$0xff] %v2036
                  %v2038 = vld [vmem:[%s2010 + $0x68] sm:$0xff]
                  %2039 = vst [vmem:[%s2011 + $0x68] sm:$0xff] %v2038
                  %v2040 = vld [vmem:[%s2010 + $0x70] sm:$0xff]
                  %2041 = vst [vmem:[%s2011 + $0x70] sm:$0xff] %v2040
                  %v2042 = vld [vmem:[%s2010 + $0x78] sm:$0xff]
                  %2043 = vst [vmem:[%s2011 + $0x78] sm:$0xff] %v2042
                  %v2044 = vld [vmem:[%s2010 + $0x80] sm:$0xff]
                  %2045 = vst [vmem:[%s2011 + $0x80] sm:$0xff] %v2044
                  %v2046 = vld [vmem:[%s2010 + $0x88] sm:$0xff]
                  %2047 = vst [vmem:[%s2011 + $0x88] sm:$0xff] %v2046
                  %v2048 = vld [vmem:[%s2010 + $0x90] sm:$0xff]
                  %2049 = vst [vmem:[%s2011 + $0x90] sm:$0xff] %v2048
                  %v2050 = vld [vmem:[%s2010 + $0x98] sm:$0xff]
                  %2051 = vst [vmem:[%s2011 + $0x98] sm:$0xff] %v2050
                  %v2052 = vld [vmem:[%s2010 + $0xa0] sm:$0xff]
                  %2053 = vst [vmem:[%s2011 + $0xa0] sm:$0xff] %v2052
                  %v2054 = vld [vmem:[%s2010 + $0xa8] sm:$0xff]
                  %2055 = vst [vmem:[%s2011 + $0xa8] sm:$0xff] %v2054
                  %v2056 = vld [vmem:[%s2010 + $0xb0] sm:$0xff]
                  %2057 = vst [vmem:[%s2011 + $0xb0] sm:$0xff] %v2056
                  %v2058 = vld [vmem:[%s2010 + $0xb8] sm:$0xff]
                  %2059 = vst [vmem:[%s2011 + $0xb8] sm:$0xff] %v2058
                  %v2060 = vld [vmem:[%s2010 + $0xc0] sm:$0xff]
                  %2061 = vst [vmem:[%s2011 + $0xc0] sm:$0xff] %v2060
                  %v2062 = vld [vmem:[%s2010 + $0xc8] sm:$0xff]
                  %2063 = vst [vmem:[%s2011 + $0xc8] sm:$0xff] %v2062
                  %v2064 = vld [vmem:[%s2010 + $0xd0] sm:$0xff]
                  %2065 = vst [vmem:[%s2011 + $0xd0] sm:$0xff] %v2064
                  %v2066 = vld [vmem:[%s2010 + $0xd8] sm:$0xff]
                  %2067 = vst [vmem:[%s2011 + $0xd8] sm:$0xff] %v2066
                  %v2068 = vld [vmem:[%s2010 + $0xe0] sm:$0xff]
                  %2069 = vst [vmem:[%s2011 + $0xe0] sm:$0xff] %v2068
                  %v2070 = vld [vmem:[%s2010 + $0xe8] sm:$0xff]
                  %2071 = vst [vmem:[%s2011 + $0xe8] sm:$0xff] %v2070
                  %v2072 = vld [vmem:[%s2010 + $0xf0] sm:$0xff]
                  %2073 = vst [vmem:[%s2011 + $0xf0] sm:$0xff] %v2072
                  %v2074 = vld [vmem:[%s2010 + $0xf8] sm:$0xff]
                  %2075 = vst [vmem:[%s2011 + $0xf8] sm:$0xff] %v2074
                  %v2076 = vld [vmem:[%s2010 + $0x100] sm:$0xff]
                  %2077 = vst [vmem:[%s2011 + $0x100] sm:$0xff] %v2076
                  %v2078 = vld [vmem:[%s2010 + $0x108] sm:$0xff]
                  %2079 = vst [vmem:[%s2011 + $0x108] sm:$0xff] %v2078
                  %v2080 = vld [vmem:[%s2010 + $0x110] sm:$0xff]
                  %2081 = vst [vmem:[%s2011 + $0x110] sm:$0xff] %v2080
                  %v2082 = vld [vmem:[%s2010 + $0x118] sm:$0xff]
                  %2083 = vst [vmem:[%s2011 + $0x118] sm:$0xff] %v2082
                  %v2084 = vld [vmem:[%s2010 + $0x120] sm:$0xff]
                  %2085 = vst [vmem:[%s2011 + $0x120] sm:$0xff] %v2084
                  %v2086 = vld [vmem:[%s2010 + $0x128] sm:$0xff]
                  %2087 = vst [vmem:[%s2011 + $0x128] sm:$0xff] %v2086
                  %v2088 = vld [vmem:[%s2010 + $0x130] sm:$0xff]
                  %2089 = vst [vmem:[%s2011 + $0x130] sm:$0xff] %v2088
                  %v2090 = vld [vmem:[%s2010 + $0x138] sm:$0xff]
                  %2091 = vst [vmem:[%s2011 + $0x138] sm:$0xff] %v2090
                  %v2092 = vld [vmem:[%s2010 + $0x140] sm:$0xff]
                  %2093 = vst [vmem:[%s2011 + $0x140] sm:$0xff] %v2092
                  %v2094 = vld [vmem:[%s2010 + $0x148] sm:$0xff]
                  %2095 = vst [vmem:[%s2011 + $0x148] sm:$0xff] %v2094
                  %v2096 = vld [vmem:[%s2010 + $0x150] sm:$0xff]
                  %2097 = vst [vmem:[%s2011 + $0x150] sm:$0xff] %v2096
                  %v2098 = vld [vmem:[%s2010 + $0x158] sm:$0xff]
                  %2099 = vst [vmem:[%s2011 + $0x158] sm:$0xff] %v2098
                  %v2100 = vld [vmem:[%s2010 + $0x160] sm:$0xff]
                  %2101 = vst [vmem:[%s2011 + $0x160] sm:$0xff] %v2100
                  %v2102 = vld [vmem:[%s2010 + $0x168] sm:$0xff]
                  %2103 = vst [vmem:[%s2011 + $0x168] sm:$0xff] %v2102
                  %v2104 = vld [vmem:[%s2010 + $0x170] sm:$0xff]
                  %2105 = vst [vmem:[%s2011 + $0x170] sm:$0xff] %v2104
                  %v2106 = vld [vmem:[%s2010 + $0x178] sm:$0xff]
                  %2107 = vst [vmem:[%s2011 + $0x178] sm:$0xff] %v2106
                  %v2108 = vld [vmem:[%s2010 + $0x180] sm:$0xff]
                  %2109 = vst [vmem:[%s2011 + $0x180] sm:$0xff] %v2108
                  %v2110 = vld [vmem:[%s2010 + $0x188] sm:$0xff]
                  %2111 = vst [vmem:[%s2011 + $0x188] sm:$0xff] %v2110
                  %v2112 = vld [vmem:[%s2010 + $0x190] sm:$0xff]
                  %2113 = vst [vmem:[%s2011 + $0x190] sm:$0xff] %v2112
                  %v2114 = vld [vmem:[%s2010 + $0x198] sm:$0xff]
                  %2115 = vst [vmem:[%s2011 + $0x198] sm:$0xff] %v2114
                  %v2116 = vld [vmem:[%s2010 + $0x1a0] sm:$0xff]
                  %2117 = vst [vmem:[%s2011 + $0x1a0] sm:$0xff] %v2116
                  %v2118 = vld [vmem:[%s2010 + $0x1a8] sm:$0xff]
                  %2119 = vst [vmem:[%s2011 + $0x1a8] sm:$0xff] %v2118
                  %v2120 = vld [vmem:[%s2010 + $0x1b0] sm:$0xff]
                  %2121 = vst [vmem:[%s2011 + $0x1b0] sm:$0xff] %v2120
                  %v2122 = vld [vmem:[%s2010 + $0x1b8] sm:$0xff]
                  %2123 = vst [vmem:[%s2011 + $0x1b8] sm:$0xff] %v2122
                  %v2124 = vld [vmem:[%s2010 + $0x1c0] sm:$0xff]
                  %2125 = vst [vmem:[%s2011 + $0x1c0] sm:$0xff] %v2124
                  %v2126 = vld [vmem:[%s2010 + $0x1c8] sm:$0xff]
                  %2127 = vst [vmem:[%s2011 + $0x1c8] sm:$0xff] %v2126
                  %v2128 = vld [vmem:[%s2010 + $0x1d0] sm:$0xff]
                  %2129 = vst [vmem:[%s2011 + $0x1d0] sm:$0xff] %v2128
                  %v2130 = vld [vmem:[%s2010 + $0x1d8] sm:$0xff]
                  %2131 = vst [vmem:[%s2011 + $0x1d8] sm:$0xff] %v2130
                  %v2132 = vld [vmem:[%s2010 + $0x1e0] sm:$0xff]
                  %2133 = vst [vmem:[%s2011 + $0x1e0] sm:$0xff] %v2132
                  %v2134 = vld [vmem:[%s2010 + $0x1e8] sm:$0xff]
                  %2135 = vst [vmem:[%s2011 + $0x1e8] sm:$0xff] %v2134
                  %v2136 = vld [vmem:[%s2010 + $0x1f0] sm:$0xff]
                  %2137 = vst [vmem:[%s2011 + $0x1f0] sm:$0xff] %v2136
                  %v2138 = vld [vmem:[%s2010 + $0x1f8] sm:$0xff]
                  %2139 = vst [vmem:[%s2011 + $0x1f8] sm:$0xff] %v2138
                  %s2140 = sadd.s32 1, %s2009
                  %p2141 = scmp.ge.s32.totalorder %s2140, %s2002
                  %s2142 = scalar_select %p2141, 0, %s2140
                  %s2143 = smul.u32 %s2142, 512
                  %s2144 = smul.u32 %s2142, 512
                  %s2145 = scalar_lea.vmem %s1810, %s2143 [#allocation2]
                  %s2146 = scalar_lea.vmem %s1821, %s2144
                $region87: #{tpu_custom_call.1} parent=81 // loop_footer
                  %s2006 = sadd.s32 %s2004, 1
                $region88: #{tpu_custom_call.1} parent=81 // loop_footer_branch
                  %2003 = sbr.rel target = $region84
                $region89: #{tpu_custom_call.1} parent=81 // loop_exit
                  _
                %s2147 = sshrl.u32 %s1817, 6
                %s2148 = sand.u32 %s1817, 63
                %s2149 = smul.u32 %s2147, 64
                %s2150 = smul.u32 8, %s2149
                %s2151 = scalar_lea.vmem %s1810, %s2150 [#allocation2]
                %s2152 = smul.u32 8, %s2149
                %s2153 = scalar_lea.vmem %s1821, %s2152
                // While loop
                $region90: #{tpu_custom_call.1} parent=81 // loop_pre_header
                  _
                $region91: #{tpu_custom_call.1} parent=81 // loop_header
                  %s2155 = sphi 0, %s2157
                  %p2156 = scmp.ge.s32.totalorder %s2155, %s2148
                  %s2160 = sphi 0, %s2167
                  %s2161 = sphi %s2151, %s2170
                  %s2162 = sphi %s2153, %s2171
                $region92: #{tpu_custom_call.1} parent=81 // loop_header_branch
                  %2159 = sbr.rel (%p2156) target = $region96
                $region93: #{tpu_custom_call.1} parent=81 // loop_body
                  %v2163 = vld [vmem:[%s2161] sm:$0xff]
                  %2164 = vst [vmem:[%s2162] sm:$0xff] %v2163
                  %s2165 = sadd.s32 1, %s2160
                  %p2166 = scmp.ge.s32.totalorder %s2165, %s2148
                  %s2167 = scalar_select %p2166, 0, %s2165
                  %s2168 = smul.u32 %s2167, 8
                  %s2169 = smul.u32 %s2167, 8
                  %s2170 = scalar_lea.vmem %s2151, %s2168 [#allocation2]
                  %s2171 = scalar_lea.vmem %s2153, %s2169
                $region94: #{tpu_custom_call.1} parent=81 // loop_footer
                  %s2157 = sadd.s32 %s2155, 1
                $region95: #{tpu_custom_call.1} parent=81 // loop_footer_branch
                  %2154 = sbr.rel target = $region91
                $region96: #{tpu_custom_call.1} parent=81 // loop_exit
                  _
              $region82: #{tpu_custom_call.1} parent=59 // pred_fallthru
                _
              // Predicated region
              $region97: #{tpu_custom_call.1} parent=59 // pred_check
                _
              $region98: #{tpu_custom_call.1} parent=59 // pred_check_branch
                %2173 = sbr.rel target = $region100
              $region99: #{tpu_custom_call.1} parent=59 // pred_region
                _
              $region100: #{tpu_custom_call.1} parent=59 // pred_fallthru
                _
            $region60: #{tpu_custom_call.1} parent=55 // pred_fallthru
              _
            // Predicated region
            $region61: #{tpu_custom_call.1} parent=55 // pred_check
              _
            $region62: #{tpu_custom_call.1} parent=55 // pred_check_branch
              %1828 = sbr.rel target = $region64
            $region63: #{tpu_custom_call.1} parent=55 // pred_region
              %s1830 = sshrl.u32 %s1817, 6
              // While loop
              $region65: #{tpu_custom_call.1} parent=63 // loop_pre_header
                _
              $region66: #{tpu_custom_call.1} parent=63 // loop_header
                %s1832 = sphi 0, %s1834
                %p1833 = scmp.ge.s32.totalorder %s1832, %s1830
                %s1837 = sphi 0, %s1970
                %s1838 = sphi %s1810, %s1973
                %s1839 = sphi %s1821, %s1974
              $region67: #{tpu_custom_call.1} parent=63 // loop_header_branch
                %1836 = sbr.rel (%p1833) target = $region71
              $region68: #{tpu_custom_call.1} parent=63 // loop_body
                %v1840 = vld [vmem:[%s1838] sm:$0xff]
                %1841 = vst [vmem:[%s1839] sm:$0xff] %v1840
                %v1842 = vld [vmem:[%s1838 + $0x8] sm:$0xff]
                %1843 = vst [vmem:[%s1839 + $0x8] sm:$0xff] %v1842
                %v1844 = vld [vmem:[%s1838 + $0x10] sm:$0xff]
                %1845 = vst [vmem:[%s1839 + $0x10] sm:$0xff] %v1844
                %v1846 = vld [vmem:[%s1838 + $0x18] sm:$0xff]
                %1847 = vst [vmem:[%s1839 + $0x18] sm:$0xff] %v1846
                %v1848 = vld [vmem:[%s1838 + $0x20] sm:$0xff]
                %1849 = vst [vmem:[%s1839 + $0x20] sm:$0xff] %v1848
                %v1850 = vld [vmem:[%s1838 + $0x28] sm:$0xff]
                %1851 = vst [vmem:[%s1839 + $0x28] sm:$0xff] %v1850
                %v1852 = vld [vmem:[%s1838 + $0x30] sm:$0xff]
                %1853 = vst [vmem:[%s1839 + $0x30] sm:$0xff] %v1852
                %v1854 = vld [vmem:[%s1838 + $0x38] sm:$0xff]
                %1855 = vst [vmem:[%s1839 + $0x38] sm:$0xff] %v1854
                %v1856 = vld [vmem:[%s1838 + $0x40] sm:$0xff]
                %1857 = vst [vmem:[%s1839 + $0x40] sm:$0xff] %v1856
                %v1858 = vld [vmem:[%s1838 + $0x48] sm:$0xff]
                %1859 = vst [vmem:[%s1839 + $0x48] sm:$0xff] %v1858
                %v1860 = vld [vmem:[%s1838 + $0x50] sm:$0xff]
                %1861 = vst [vmem:[%s1839 + $0x50] sm:$0xff] %v1860
                %v1862 = vld [vmem:[%s1838 + $0x58] sm:$0xff]
                %1863 = vst [vmem:[%s1839 + $0x58] sm:$0xff] %v1862
                %v1864 = vld [vmem:[%s1838 + $0x60] sm:$0xff]
                %1865 = vst [vmem:[%s1839 + $0x60] sm:$0xff] %v1864
                %v1866 = vld [vmem:[%s1838 + $0x68] sm:$0xff]
                %1867 = vst [vmem:[%s1839 + $0x68] sm:$0xff] %v1866
                %v1868 = vld [vmem:[%s1838 + $0x70] sm:$0xff]
                %1869 = vst [vmem:[%s1839 + $0x70] sm:$0xff] %v1868
                %v1870 = vld [vmem:[%s1838 + $0x78] sm:$0xff]
                %1871 = vst [vmem:[%s1839 + $0x78] sm:$0xff] %v1870
                %v1872 = vld [vmem:[%s1838 + $0x80] sm:$0xff]
                %1873 = vst [vmem:[%s1839 + $0x80] sm:$0xff] %v1872
                %v1874 = vld [vmem:[%s1838 + $0x88] sm:$0xff]
                %1875 = vst [vmem:[%s1839 + $0x88] sm:$0xff] %v1874
                %v1876 = vld [vmem:[%s1838 + $0x90] sm:$0xff]
                %1877 = vst [vmem:[%s1839 + $0x90] sm:$0xff] %v1876
                %v1878 = vld [vmem:[%s1838 + $0x98] sm:$0xff]
                %1879 = vst [vmem:[%s1839 + $0x98] sm:$0xff] %v1878
                %v1880 = vld [vmem:[%s1838 + $0xa0] sm:$0xff]
                %1881 = vst [vmem:[%s1839 + $0xa0] sm:$0xff] %v1880
                %v1882 = vld [vmem:[%s1838 + $0xa8] sm:$0xff]
                %1883 = vst [vmem:[%s1839 + $0xa8] sm:$0xff] %v1882
                %v1884 = vld [vmem:[%s1838 + $0xb0] sm:$0xff]
                %1885 = vst [vmem:[%s1839 + $0xb0] sm:$0xff] %v1884
                %v1886 = vld [vmem:[%s1838 + $0xb8] sm:$0xff]
                %1887 = vst [vmem:[%s1839 + $0xb8] sm:$0xff] %v1886
                %v1888 = vld [vmem:[%s1838 + $0xc0] sm:$0xff]
                %1889 = vst [vmem:[%s1839 + $0xc0] sm:$0xff] %v1888
                %v1890 = vld [vmem:[%s1838 + $0xc8] sm:$0xff]
                %1891 = vst [vmem:[%s1839 + $0xc8] sm:$0xff] %v1890
                %v1892 = vld [vmem:[%s1838 + $0xd0] sm:$0xff]
                %1893 = vst [vmem:[%s1839 + $0xd0] sm:$0xff] %v1892
                %v1894 = vld [vmem:[%s1838 + $0xd8] sm:$0xff]
                %1895 = vst [vmem:[%s1839 + $0xd8] sm:$0xff] %v1894
                %v1896 = vld [vmem:[%s1838 + $0xe0] sm:$0xff]
                %1897 = vst [vmem:[%s1839 + $0xe0] sm:$0xff] %v1896
                %v1898 = vld [vmem:[%s1838 + $0xe8] sm:$0xff]
                %1899 = vst [vmem:[%s1839 + $0xe8] sm:$0xff] %v1898
                %v1900 = vld [vmem:[%s1838 + $0xf0] sm:$0xff]
                %1901 = vst [vmem:[%s1839 + $0xf0] sm:$0xff] %v1900
                %v1902 = vld [vmem:[%s1838 + $0xf8] sm:$0xff]
                %1903 = vst [vmem:[%s1839 + $0xf8] sm:$0xff] %v1902
                %v1904 = vld [vmem:[%s1838 + $0x100] sm:$0xff]
                %1905 = vst [vmem:[%s1839 + $0x100] sm:$0xff] %v1904
                %v1906 = vld [vmem:[%s1838 + $0x108] sm:$0xff]
                %1907 = vst [vmem:[%s1839 + $0x108] sm:$0xff] %v1906
                %v1908 = vld [vmem:[%s1838 + $0x110] sm:$0xff]
                %1909 = vst [vmem:[%s1839 + $0x110] sm:$0xff] %v1908
                %v1910 = vld [vmem:[%s1838 + $0x118] sm:$0xff]
                %1911 = vst [vmem:[%s1839 + $0x118] sm:$0xff] %v1910
                %v1912 = vld [vmem:[%s1838 + $0x120] sm:$0xff]
                %1913 = vst [vmem:[%s1839 + $0x120] sm:$0xff] %v1912
                %v1914 = vld [vmem:[%s1838 + $0x128] sm:$0xff]
                %1915 = vst [vmem:[%s1839 + $0x128] sm:$0xff] %v1914
                %v1916 = vld [vmem:[%s1838 + $0x130] sm:$0xff]
                %1917 = vst [vmem:[%s1839 + $0x130] sm:$0xff] %v1916
                %v1918 = vld [vmem:[%s1838 + $0x138] sm:$0xff]
                %1919 = vst [vmem:[%s1839 + $0x138] sm:$0xff] %v1918
                %v1920 = vld [vmem:[%s1838 + $0x140] sm:$0xff]
                %1921 = vst [vmem:[%s1839 + $0x140] sm:$0xff] %v1920
                %v1922 = vld [vmem:[%s1838 + $0x148] sm:$0xff]
                %1923 = vst [vmem:[%s1839 + $0x148] sm:$0xff] %v1922
                %v1924 = vld [vmem:[%s1838 + $0x150] sm:$0xff]
                %1925 = vst [vmem:[%s1839 + $0x150] sm:$0xff] %v1924
                %v1926 = vld [vmem:[%s1838 + $0x158] sm:$0xff]
                %1927 = vst [vmem:[%s1839 + $0x158] sm:$0xff] %v1926
                %v1928 = vld [vmem:[%s1838 + $0x160] sm:$0xff]
                %1929 = vst [vmem:[%s1839 + $0x160] sm:$0xff] %v1928
                %v1930 = vld [vmem:[%s1838 + $0x168] sm:$0xff]
                %1931 = vst [vmem:[%s1839 + $0x168] sm:$0xff] %v1930
                %v1932 = vld [vmem:[%s1838 + $0x170] sm:$0xff]
                %1933 = vst [vmem:[%s1839 + $0x170] sm:$0xff] %v1932
                %v1934 = vld [vmem:[%s1838 + $0x178] sm:$0xff]
                %1935 = vst [vmem:[%s1839 + $0x178] sm:$0xff] %v1934
                %v1936 = vld [vmem:[%s1838 + $0x180] sm:$0xff]
                %1937 = vst [vmem:[%s1839 + $0x180] sm:$0xff] %v1936
                %v1938 = vld [vmem:[%s1838 + $0x188] sm:$0xff]
                %1939 = vst [vmem:[%s1839 + $0x188] sm:$0xff] %v1938
                %v1940 = vld [vmem:[%s1838 + $0x190] sm:$0xff]
                %1941 = vst [vmem:[%s1839 + $0x190] sm:$0xff] %v1940
                %v1942 = vld [vmem:[%s1838 + $0x198] sm:$0xff]
                %1943 = vst [vmem:[%s1839 + $0x198] sm:$0xff] %v1942
                %v1944 = vld [vmem:[%s1838 + $0x1a0] sm:$0xff]
                %1945 = vst [vmem:[%s1839 + $0x1a0] sm:$0xff] %v1944
                %v1946 = vld [vmem:[%s1838 + $0x1a8] sm:$0xff]
                %1947 = vst [vmem:[%s1839 + $0x1a8] sm:$0xff] %v1946
                %v1948 = vld [vmem:[%s1838 + $0x1b0] sm:$0xff]
                %1949 = vst [vmem:[%s1839 + $0x1b0] sm:$0xff] %v1948
                %v1950 = vld [vmem:[%s1838 + $0x1b8] sm:$0xff]
                %1951 = vst [vmem:[%s1839 + $0x1b8] sm:$0xff] %v1950
                %v1952 = vld [vmem:[%s1838 + $0x1c0] sm:$0xff]
                %1953 = vst [vmem:[%s1839 + $0x1c0] sm:$0xff] %v1952
                %v1954 = vld [vmem:[%s1838 + $0x1c8] sm:$0xff]
                %1955 = vst [vmem:[%s1839 + $0x1c8] sm:$0xff] %v1954
                %v1956 = vld [vmem:[%s1838 + $0x1d0] sm:$0xff]
                %1957 = vst [vmem:[%s1839 + $0x1d0] sm:$0xff] %v1956
                %v1958 = vld [vmem:[%s1838 + $0x1d8] sm:$0xff]
                %1959 = vst [vmem:[%s1839 + $0x1d8] sm:$0xff] %v1958
                %v1960 = vld [vmem:[%s1838 + $0x1e0] sm:$0xff]
                %1961 = vst [vmem:[%s1839 + $0x1e0] sm:$0xff] %v1960
                %v1962 = vld [vmem:[%s1838 + $0x1e8] sm:$0xff]
                %1963 = vst [vmem:[%s1839 + $0x1e8] sm:$0xff] %v1962
                %v1964 = vld [vmem:[%s1838 + $0x1f0] sm:$0xff]
                %1965 = vst [vmem:[%s1839 + $0x1f0] sm:$0xff] %v1964
                %v1966 = vld [vmem:[%s1838 + $0x1f8] sm:$0xff]
                %1967 = vst [vmem:[%s1839 + $0x1f8] sm:$0xff] %v1966
                %s1968 = sadd.s32 1, %s1837
                %p1969 = scmp.ge.s32.totalorder %s1968, %s1830
                %s1970 = scalar_select %p1969, 0, %s1968
                %s1971 = smul.u32 %s1970, 512
                %s1972 = smul.u32 %s1970, 512
                %s1973 = scalar_lea.vmem %s1810, %s1971 [#allocation2]
                %s1974 = scalar_lea.vmem %s1821, %s1972
              $region69: #{tpu_custom_call.1} parent=63 // loop_footer
                %s1834 = sadd.s32 %s1832, 1
              $region70: #{tpu_custom_call.1} parent=63 // loop_footer_branch
                %1831 = sbr.rel target = $region66
              $region71: #{tpu_custom_call.1} parent=63 // loop_exit
                _
              %s1975 = sshrl.u32 %s1817, 6
              %s1976 = sand.u32 %s1817, 63
              %s1977 = smul.u32 %s1975, 64
              %s1978 = smul.u32 8, %s1977
              %s1979 = scalar_lea.vmem %s1810, %s1978 [#allocation2]
              %s1980 = smul.u32 8, %s1977
              %s1981 = scalar_lea.vmem %s1821, %s1980
              // While loop
              $region72: #{tpu_custom_call.1} parent=63 // loop_pre_header
                _
              $region73: #{tpu_custom_call.1} parent=63 // loop_header
                %s1983 = sphi 0, %s1985
                %p1984 = scmp.ge.s32.totalorder %s1983, %s1976
                %s1988 = sphi 0, %s1995
                %s1989 = sphi %s1979, %s1998
                %s1990 = sphi %s1981, %s1999
              $region74: #{tpu_custom_call.1} parent=63 // loop_header_branch
                %1987 = sbr.rel (%p1984) target = $region78
              $region75: #{tpu_custom_call.1} parent=63 // loop_body
                %v1991 = vld [vmem:[%s1989] sm:$0xff]
                %1992 = vst [vmem:[%s1990] sm:$0xff] %v1991
                %s1993 = sadd.s32 1, %s1988
                %p1994 = scmp.ge.s32.totalorder %s1993, %s1976
                %s1995 = scalar_select %p1994, 0, %s1993
                %s1996 = smul.u32 %s1995, 8
                %s1997 = smul.u32 %s1995, 8
                %s1998 = scalar_lea.vmem %s1979, %s1996 [#allocation2]
                %s1999 = scalar_lea.vmem %s1981, %s1997
              $region76: #{tpu_custom_call.1} parent=63 // loop_footer
                %s1985 = sadd.s32 %s1983, 1
              $region77: #{tpu_custom_call.1} parent=63 // loop_footer_branch
                %1982 = sbr.rel target = $region73
              $region78: #{tpu_custom_call.1} parent=63 // loop_exit
                _
            $region64: #{tpu_custom_call.1} parent=55 // pred_fallthru
              _
          $region56: #{tpu_custom_call.1} parent=51 // pred_fallthru
            _
          %2174 = vnop
        $region52: #{tpu_custom_call.1} parent=47 // pred_fallthru
          _
      $region48: #{tpu_custom_call.1} parent=5 // pred_fallthru
        _
      %p2175 = scmp.le.s32.totalorder 2, %s13
      // Predicated region
      $region101: #{tpu_custom_call.1} parent=5 // pred_check
        %p2176 = pneg %p2175
      $region102: #{tpu_custom_call.1} parent=5 // pred_check_branch
        %2178 = sbr.rel (%p2176) target = $region104
      $region103: #{tpu_custom_call.1} parent=5 // pred_region
        %s2179 = ssub.s32 %s13, 2
        // Predicated region
        $region105: #{tpu_custom_call.1} parent=103 // pred_check
          %p2180 = pneg %p194
        $region106: #{tpu_custom_call.1} parent=103 // pred_check_branch
          %2182 = sbr.rel (%p2180) target = $region108
        $region107: #{tpu_custom_call.1} parent=103 // pred_region
          %s2183 = sand.u32 %s179, 1
          %s2184 = sand.u32 %s179, 1
          %s2185 = smul.addr %s2184, 512
          %s2186 = scalar_lea.vmem [#allocation2], %s2185
        $region108: #{tpu_custom_call.1} parent=103 // pred_fallthru
          _
      $region104: #{tpu_custom_call.1} parent=5 // pred_fallthru
        _
    $region6: #{tpu_custom_call.1} parent=1 // loop_footer
      %s17 = sadd.s32 1, %s13
    $region7: #{tpu_custom_call.1} parent=1 // loop_footer_branch
      %12 = sbr.rel target = $region3
    $region8: #{tpu_custom_call.1} parent=1 // loop_exit
      _

</llo_original>
